<compile_context>
chip_gen: v7x
topology: tpu7x:2x2x1
jax: 0.10.0
libtpu: 0.0.40
codegen_flags: <defaults>
</compile_context>

<pallas_src>
import functools
import math

import jax
import jax.numpy as jnp
from jax.experimental import pallas as pl
from jax.experimental.pallas import tpu as pltpu


# ---------------------------------------------------------------------------
# in-kernel helpers (traced inside the Pallas kernel)
# ---------------------------------------------------------------------------
def _layer_norm(x, w, b, eps):
    # x: [S, D]; w, b: [1, D]  (PyTorch LayerNorm: biased variance), f32 math.
    mean = jnp.mean(x, axis=-1, keepdims=True)
    var = jnp.mean(jnp.square(x - mean), axis=-1, keepdims=True)
    return (x - mean) * jax.lax.rsqrt(var + eps) * w + b


def _gelu_new(x):
    # ACT2FN["gelu_new"]: tanh-approximate GELU used by ALBERT.
    return 0.5 * x * (1.0 + jnp.tanh(
        jnp.sqrt(2.0 / jnp.pi) * (x + 0.044715 * x * x * x)))


# ---------------------------------------------------------------------------
# Fused kernel: 6 shared-weight LeanAlbertLayers + post LayerNorm, one batch elem
# ---------------------------------------------------------------------------
def body_expert_kernel(x_ref,
                       ln1w_ref, ln1b_ref, wqkv_ref, bqkv_ref, wo_ref, bo_ref,
                       ln2w_ref, ln2b_ref, wi_ref, bi_ref, wh_ref, bh_ref,
                       lnpw_ref, lnpb_ref,
                       o_ref,
                       *, num_layers, num_heads, ln_eps, kv_block):
    x0 = x_ref[0]                                   # [S, H] f32
    S, H = x0.shape
    hd = H // num_heads
    scale = 1.0 / math.sqrt(hd)
    num_kv = S // kv_block

    # Shared ALBERT weight group: loaded once, VMEM-resident for all layers.
    # Matmul weights arrive as bf16 (cast in the wrapper); LN params / biases f32.
    ln1w, ln1b = ln1w_ref[...], ln1b_ref[...]
    wqkv, bqkv = wqkv_ref[...], bqkv_ref[...]
    wo, bo = wo_ref[...], bo_ref[...]
    ln2w, ln2b = ln2w_ref[...], ln2b_ref[...]
    wi, bi = wi_ref[...], bi_ref[...]
    wh, bh = wh_ref[...], bh_ref[...]

    # Hoisted once per grid step (NOT per layer / per KV block).
    q_pos = jax.lax.broadcasted_iota(jnp.int32, (S, 1), 0)          # [S, 1]

    def layer_body(_, h):
        # ---- LeanSelfAttention: pre-LN -> QKV -> causal MHA -> out proj -> residual
        h_ln = _layer_norm(h, ln1w, ln1b, ln_eps)
        qkv = jnp.dot(h_ln.astype(jnp.bfloat16), wqkv,
                      preferred_element_type=jnp.float32) + bqkv     # [S, 3H] f32
        qh = jnp.swapaxes(qkv[:, :H].reshape(S, num_heads, hd), 0, 1)        # [nh,S,hd]
        kh = jnp.swapaxes(qkv[:, H:2 * H].reshape(S, num_heads, hd), 0, 1)
        vh = jnp.swapaxes(qkv[:, 2 * H:].reshape(S, num_heads, hd), 0, 1)
        qh = qh.astype(jnp.bfloat16)
        kh = kh.astype(jnp.bfloat16)
        vh = vh.astype(jnp.bfloat16)

        # Flash-style online softmax over KV blocks (bounded VMEM per block).
        m_i = jnp.full((num_heads, S, 1), -1e30, jnp.float32)
        l_i = jnp.zeros((num_heads, S, 1), jnp.float32)
        acc = jnp.zeros((num_heads, S, hd), jnp.float32)
        for j in range(num_kv):                                     # static unroll
            k_blk = kh[:, j * kv_block:(j + 1) * kv_block, :]       # [nh,kvb,hd]
            v_blk = vh[:, j * kv_block:(j + 1) * kv_block, :]
            s = jnp.einsum('hqd,hkd->hqk', qh, k_blk,
                           preferred_element_type=jnp.float32) * scale
            kv_pos = (jax.lax.broadcasted_iota(jnp.int32, (1, kv_block), 1)
                      + j * kv_block)                               # [1, kvb]
            causal = q_pos >= kv_pos                                # [S, kvb]
            s = jnp.where(causal[None, :, :], s, jnp.float32(-10000.0))  # masked_bias
            m_new = jnp.maximum(m_i, jnp.max(s, axis=-1, keepdims=True))
            alpha = jnp.exp(m_i - m_new)
            p = jnp.exp(s - m_new)
            l_i = alpha * l_i + jnp.sum(p, axis=-1, keepdims=True)
            acc = alpha * acc + jnp.einsum('hqk,hkd->hqd', p.astype(jnp.bfloat16),
                                           v_blk, preferred_element_type=jnp.float32)
            m_i = m_new
        attn = acc * pl.reciprocal(l_i, approx=True)                # [nh, S, hd]
        attn = jnp.swapaxes(attn, 0, 1).reshape(S, H)               # [S, H]

        proj = jnp.dot(attn.astype(jnp.bfloat16), wo,
                       preferred_element_type=jnp.float32) + bo
        h = proj + h                                                # residual

        # ---- LeanFFN: pre-LN -> i2h -> gelu_new -> h2o -> residual
        h_ln2 = _layer_norm(h, ln2w, ln2b, ln_eps)
        pre = jnp.dot(h_ln2.astype(jnp.bfloat16), wi,
                      preferred_element_type=jnp.float32) + bi
        act = _gelu_new(pre)                       # non-gated (hidden_act_gated=False)
        out = jnp.dot(act.astype(jnp.bfloat16), wh,
                      preferred_element_type=jnp.float32) + bh
        return out + h                                              # residual

    h_final = jax.lax.fori_loop(0, num_layers, layer_body, x0)

    # post_layer_norm (eps = layer_norm_eps = 1e-12)
    o_ref[0] = _layer_norm(h_final, lnpw_ref[...], lnpb_ref[...], ln_eps).astype(o_ref.dtype)


# ---------------------------------------------------------------------------
# Python wrapper
# ---------------------------------------------------------------------------
def body_expert_forward(hidden_states, params, *, num_layers, num_heads, kv_block=None):
    B, S, H = hidden_states.shape
    if kv_block is None:
        kv_block = S if S <= 512 else 512
    assert S % kv_block == 0, "kv_block must divide sequence length"

    # bf16 weights for the MXU (halves weight VMEM residency + HBM traffic);
    # LN params and biases stay f32.
    bf16 = jnp.bfloat16
    weights = [
        params["ln1_w"], params["ln1_b"],
        params["wqkv"].astype(bf16), params["bqkv"],
        params["wo"].astype(bf16), params["bo"],
        params["ln2_w"], params["ln2_b"],
        params["wi"].astype(bf16), params["bi"],
        params["wh"].astype(bf16), params["bh"],
        params["lnp_w"], params["lnp_b"],
    ]
    # TODO(synk): for very large H (e.g. albert-xxlarge H=4096) the shared weight
    # group cannot stay VMEM-resident; stream wqkv/wi/wh with a K/N grid reduction
    # axis (P1+P3 accumulator pattern) and raise vmem_limit_bytes accordingly.

    x_spec = pl.BlockSpec((1, S, H), lambda b: (b, 0, 0))
    # Constant index_map -> weights are fetched once and re-used across grid steps.
    w_specs = [pl.BlockSpec(w.shape, lambda b: (0, 0)) for w in weights]

    kernel = functools.partial(body_expert_kernel, num_layers=num_layers,
                               num_heads=num_heads, ln_eps=1e-12, kv_block=kv_block)

    return pl.pallas_call(
        kernel,
        out_shape=jax.ShapeDtypeStruct((B, S, H), jnp.float32),
        grid=(B,),
        in_specs=[x_spec] + w_specs,
        out_specs=x_spec,
        input_output_aliases={0: 0},     # re-use the hidden-state HBM buffer
        compiler_params=pltpu.CompilerParams(dimension_semantics=("parallel",)),
    )(hidden_states, *weights)


# ---------------------------------------------------------------------------
# deterministic parameter init (synthetic; shapes follow the module __init__)
# ---------------------------------------------------------------------------
def init_params(key, H, I):
    ks = jax.random.split(key, 4)
    w = lambda k, shape: 0.02 * jax.random.normal(k, shape, jnp.float32)
    return dict(
        # LeanSelfAttention (stored [in, out] so kernels compute x @ W + b)
        ln1_w=jnp.ones((1, H), jnp.float32), ln1_b=jnp.zeros((1, H), jnp.float32),
        wqkv=w(ks[0], (H, 3 * H)), bqkv=jnp.zeros((1, 3 * H), jnp.float32),
        wo=w(ks[1], (H, H)), bo=jnp.zeros((1, H), jnp.float32),
        # LeanFFN
        ln2_w=jnp.ones((1, H), jnp.float32), ln2_b=jnp.zeros((1, H), jnp.float32),
        wi=w(ks[2], (H, I)), bi=jnp.zeros((1, I), jnp.float32),
        wh=w(ks[3], (I, H)), bh=jnp.zeros((1, H), jnp.float32),
        # post_layer_norm
        lnp_w=jnp.ones((1, H), jnp.float32), lnp_b=jnp.zeros((1, H), jnp.float32),
    )


if __name__ == "__main__":
    # Small shapes consistent with the module (SEQUENCE_LENGTH / hid_dim scaled down):
    B, S, H = 2, 8, 32
    NUM_HEADS = 4               # albert-xxlarge-v2 uses 64; scaled down with H
    I = 4 * H                   # intermediate_size = 4 * hidden_size
    NUM_LAYERS = 6              # config.num_hidden_layers (weights shared, 1 group)

    key = jax.random.PRNGKey(0)
    k_x, k_p = jax.random.split(key)
    hidden_states = jax.random.normal(k_x, (B, S, H), jnp.float32)
    params = init_params(k_p, H, I)

    fwd = jax.jit(functools.partial(body_expert_forward,
                                    num_layers=NUM_LAYERS, num_heads=NUM_HEADS))
    out = fwd(hidden_states, params)    # [B, S, H] hidden states after post-LN
    jax.block_until_ready(out)
    assert out.shape == (B, S, H) and bool(jnp.all(jnp.isfinite(out)))
    print("KERNEL_OK")
</pallas_src>

<mosaic_0001>
module attributes {stable_mosaic.version = 11 : i64} {
  func.func @body_expert_kernel(%arg0: i32, %arg1: memref<1x8x32xf32, #tpu.memory_space<vmem>>, %arg2: memref<1x32xf32, #tpu.memory_space<vmem>>, %arg3: memref<1x32xf32, #tpu.memory_space<vmem>>, %arg4: memref<32x96xbf16, #tpu.memory_space<vmem>>, %arg5: memref<1x96xf32, #tpu.memory_space<vmem>>, %arg6: memref<32x32xbf16, #tpu.memory_space<vmem>>, %arg7: memref<1x32xf32, #tpu.memory_space<vmem>>, %arg8: memref<1x32xf32, #tpu.memory_space<vmem>>, %arg9: memref<1x32xf32, #tpu.memory_space<vmem>>, %arg10: memref<32x128xbf16, #tpu.memory_space<vmem>>, %arg11: memref<1x128xf32, #tpu.memory_space<vmem>>, %arg12: memref<128x32xbf16, #tpu.memory_space<vmem>>, %arg13: memref<1x32xf32, #tpu.memory_space<vmem>>, %arg14: memref<1x32xf32, #tpu.memory_space<vmem>>, %arg15: memref<1x32xf32, #tpu.memory_space<vmem>>, %arg16: memref<1x8x32xf32, #tpu.memory_space<vmem>>) attributes {dimension_semantics = [#tpu.dimension_semantics<parallel>], iteration_bounds = array<i64: 2>, scalar_prefetch = 0 : i64, scratch_operands = 0 : i64, tpu.core_type = #tpu.core_type<tc>, window_params = [{transform_indices = @transform_0, window_bounds = array<i64: 1, 8, 32>}, {pipeline_mode = #tpu.pipeline_mode<synchronous>, transform_indices = @transform_1, window_bounds = array<i64: 1, 32>}, {pipeline_mode = #tpu.pipeline_mode<synchronous>, transform_indices = @transform_2, window_bounds = array<i64: 1, 32>}, {pipeline_mode = #tpu.pipeline_mode<synchronous>, transform_indices = @transform_3, window_bounds = array<i64: 32, 96>}, {pipeline_mode = #tpu.pipeline_mode<synchronous>, transform_indices = @transform_4, window_bounds = array<i64: 1, 96>}, {pipeline_mode = #tpu.pipeline_mode<synchronous>, transform_indices = @transform_5, window_bounds = array<i64: 32, 32>}, {pipeline_mode = #tpu.pipeline_mode<synchronous>, transform_indices = @transform_6, window_bounds = array<i64: 1, 32>}, {pipeline_mode = #tpu.pipeline_mode<synchronous>, transform_indices = @transform_7, window_bounds = array<i64: 1, 32>}, {pipeline_mode = #tpu.pipeline_mode<synchronous>, transform_indices = @transform_8, window_bounds = array<i64: 1, 32>}, {pipeline_mode = #tpu.pipeline_mode<synchronous>, transform_indices = @transform_9, window_bounds = array<i64: 32, 128>}, {pipeline_mode = #tpu.pipeline_mode<synchronous>, transform_indices = @transform_10, window_bounds = array<i64: 1, 128>}, {pipeline_mode = #tpu.pipeline_mode<synchronous>, transform_indices = @transform_11, window_bounds = array<i64: 128, 32>}, {pipeline_mode = #tpu.pipeline_mode<synchronous>, transform_indices = @transform_12, window_bounds = array<i64: 1, 32>}, {pipeline_mode = #tpu.pipeline_mode<synchronous>, transform_indices = @transform_13, window_bounds = array<i64: 1, 32>}, {pipeline_mode = #tpu.pipeline_mode<synchronous>, transform_indices = @transform_14, window_bounds = array<i64: 1, 32>}, {transform_indices = @transform_15, window_bounds = array<i64: 1, 8, 32>}]} {
    %c0 = arith.constant 0 : index
    %c0_0 = arith.constant 0 : index
    %c0_1 = arith.constant 0 : index
    %0 = vector.load %arg1[%c0, %c0_0, %c0_1] : memref<1x8x32xf32, #tpu.memory_space<vmem>>, vector<1x8x32xf32>
    %1 = vector.shape_cast %0 : vector<1x8x32xf32> to vector<8x32xf32>
    %c0_2 = arith.constant 0 : index
    %c0_3 = arith.constant 0 : index
    %2 = vector.load %arg2[%c0_2, %c0_3] : memref<1x32xf32, #tpu.memory_space<vmem>>, vector<1x32xf32>
    %c0_4 = arith.constant 0 : index
    %c0_5 = arith.constant 0 : index
    %3 = vector.load %arg3[%c0_4, %c0_5] : memref<1x32xf32, #tpu.memory_space<vmem>>, vector<1x32xf32>
    %c0_6 = arith.constant 0 : index
    %c0_7 = arith.constant 0 : index
    %4 = vector.load %arg4[%c0_6, %c0_7] : memref<32x96xbf16, #tpu.memory_space<vmem>>, vector<32x96xbf16>
    %c0_8 = arith.constant 0 : index
    %c0_9 = arith.constant 0 : index
    %5 = vector.load %arg5[%c0_8, %c0_9] : memref<1x96xf32, #tpu.memory_space<vmem>>, vector<1x96xf32>
    %c0_10 = arith.constant 0 : index
    %c0_11 = arith.constant 0 : index
    %6 = vector.load %arg6[%c0_10, %c0_11] : memref<32x32xbf16, #tpu.memory_space<vmem>>, vector<32x32xbf16>
    %c0_12 = arith.constant 0 : index
    %c0_13 = arith.constant 0 : index
    %7 = vector.load %arg7[%c0_12, %c0_13] : memref<1x32xf32, #tpu.memory_space<vmem>>, vector<1x32xf32>
    %c0_14 = arith.constant 0 : index
    %c0_15 = arith.constant 0 : index
    %8 = vector.load %arg8[%c0_14, %c0_15] : memref<1x32xf32, #tpu.memory_space<vmem>>, vector<1x32xf32>
    %c0_16 = arith.constant 0 : index
    %c0_17 = arith.constant 0 : index
    %9 = vector.load %arg9[%c0_16, %c0_17] : memref<1x32xf32, #tpu.memory_space<vmem>>, vector<1x32xf32>
    %c0_18 = arith.constant 0 : index
    %c0_19 = arith.constant 0 : index
    %10 = vector.load %arg10[%c0_18, %c0_19] : memref<32x128xbf16, #tpu.memory_space<vmem>>, vector<32x128xbf16>
    %c0_20 = arith.constant 0 : index
    %c0_21 = arith.constant 0 : index
    %11 = vector.load %arg11[%c0_20, %c0_21] : memref<1x128xf32, #tpu.memory_space<vmem>>, vector<1x128xf32>
    %c0_22 = arith.constant 0 : index
    %c0_23 = arith.constant 0 : index
    %12 = vector.load %arg12[%c0_22, %c0_23] : memref<128x32xbf16, #tpu.memory_space<vmem>>, vector<128x32xbf16>
    %c0_24 = arith.constant 0 : index
    %c0_25 = arith.constant 0 : index
    %13 = vector.load %arg13[%c0_24, %c0_25] : memref<1x32xf32, #tpu.memory_space<vmem>>, vector<1x32xf32>
    %14 = tpu.iota {dimensions = array<i32: 0>} : vector<8x1xi32>
    %c0_i32 = arith.constant 0 : i32
    %c6_i32 = arith.constant 6 : i32
    %15 = arith.addi %c0_i32, %c6_i32 : i32
    %c1_i32 = arith.constant 1 : i32
    %16 = scf.for %arg17 = %c0_i32 to %15 step %c1_i32 iter_args(%arg18 = %1) -> (vector<8x32xf32>)  : i32 {
      %cst_37 = arith.constant dense<0.000000e+00> : vector<8xf32>
      %44 = vector.multi_reduction <add>, %arg18, %cst_37 [1] : vector<8x32xf32> to vector<8xf32>
      %45 = vector.shape_cast %44 : vector<8xf32> to vector<8x1xf32>
      %cst_38 = arith.constant 3.200000e+01 : f32
      %46 = vector.broadcast %cst_38 : f32 to vector<8x1xf32>
      %47 = arith.divf %45, %46 : vector<8x1xf32>
      %48 = vector.broadcast %47 : vector<8x1xf32> to vector<8x32xf32>
      %49 = arith.subf %arg18, %48 : vector<8x32xf32>
      %50 = arith.mulf %49, %49 : vector<8x32xf32>
      %cst_39 = arith.constant dense<0.000000e+00> : vector<8xf32>
      %51 = vector.multi_reduction <add>, %50, %cst_39 [1] : vector<8x32xf32> to vector<8xf32>
      %52 = vector.shape_cast %51 : vector<8xf32> to vector<8x1xf32>
      %cst_40 = arith.constant 3.200000e+01 : f32
      %53 = vector.broadcast %cst_40 : f32 to vector<8x1xf32>
      %54 = arith.divf %52, %53 : vector<8x1xf32>
      %55 = vector.broadcast %47 : vector<8x1xf32> to vector<8x32xf32>
      %56 = arith.subf %arg18, %55 : vector<8x32xf32>
      %cst_41 = arith.constant 9.99999996E-13 : f32
      %57 = vector.broadcast %cst_41 : f32 to vector<8x1xf32>
      %58 = arith.addf %54, %57 : vector<8x1xf32>
      %59 = math.rsqrt %58 : vector<8x1xf32>
      %60 = vector.broadcast %59 : vector<8x1xf32> to vector<8x32xf32>
      %61 = arith.mulf %56, %60 : vector<8x32xf32>
      %62 = vector.broadcast %2 : vector<1x32xf32> to vector<8x32xf32>
      %63 = arith.mulf %61, %62 : vector<8x32xf32>
      %64 = vector.broadcast %3 : vector<1x32xf32> to vector<8x32xf32>
      %65 = arith.addf %63, %64 : vector<8x32xf32>
      %66 = arith.truncf %65 : vector<8x32xf32> to vector<8x32xbf16>
      %cst_42 = arith.constant dense<0.000000e+00> : vector<8x96xf32>
      %67 = tpu.matmul %66, %4, %cst_42 {dimension_numbers = #tpu.dot_dimension_numbers<[1], [0], [0], [1], [0, 0, 1, 1], [], []>} : vector<8x32xbf16>, vector<32x96xbf16>, vector<8x96xf32> -> vector<8x96xf32>
      %68 = vector.broadcast %5 : vector<1x96xf32> to vector<8x96xf32>
      %69 = arith.addf %67, %68 : vector<8x96xf32>
      %70 = vector.extract_strided_slice %69 {offsets = [0, 0], sizes = [8, 32], strides = [1, 1]} : vector<8x96xf32> to vector<8x32xf32>
      %71 = vector.shape_cast %70 : vector<8x32xf32> to vector<8x4x8xf32>
      %72 = tpu.transpose %71, [1, 0, 2] : vector<8x4x8xf32> -> vector<4x8x8xf32>
      %73 = vector.extract_strided_slice %69 {offsets = [0, 32], sizes = [8, 32], strides = [1, 1]} : vector<8x96xf32> to vector<8x32xf32>
      %74 = vector.shape_cast %73 : vector<8x32xf32> to vector<8x4x8xf32>
      %75 = tpu.transpose %74, [1, 0, 2] : vector<8x4x8xf32> -> vector<4x8x8xf32>
      %76 = vector.extract_strided_slice %69 {offsets = [0, 64], sizes = [8, 32], strides = [1, 1]} : vector<8x96xf32> to vector<8x32xf32>
      %77 = vector.shape_cast %76 : vector<8x32xf32> to vector<8x4x8xf32>
      %78 = tpu.transpose %77, [1, 0, 2] : vector<8x4x8xf32> -> vector<4x8x8xf32>
      %79 = arith.truncf %72 : vector<4x8x8xf32> to vector<4x8x8xbf16>
      %80 = arith.truncf %75 : vector<4x8x8xf32> to vector<4x8x8xbf16>
      %81 = arith.truncf %78 : vector<4x8x8xf32> to vector<4x8x8xbf16>
      %cst_43 = arith.constant -1.000000e+30 : f32
      %82 = vector.broadcast %cst_43 : f32 to vector<4x8x1xf32>
      %cst_44 = arith.constant 0.000000e+00 : f32
      %83 = vector.broadcast %cst_44 : f32 to vector<4x8x1xf32>
      %cst_45 = arith.constant 0.000000e+00 : f32
      %84 = vector.broadcast %cst_45 : f32 to vector<4x8x8xf32>
      "tpu.trace_start"() <{level = 10 : i32, message = "hqd,hkd->hqk"}> : () -> ()
      %cst_46 = arith.constant dense<0.000000e+00> : vector<4x8x8xf32>
      %85 = tpu.matmul %79, %80, %cst_46 {dimension_numbers = #tpu.dot_dimension_numbers<[2], [2], [1], [1], [0, 0, 0, 1, 1, 1], [0], [0]>} : vector<4x8x8xbf16>, vector<4x8x8xbf16>, vector<4x8x8xf32> -> vector<4x8x8xf32>
      "tpu.trace_stop"() : () -> ()
      %cst_47 = arith.constant 0.353553385 : f32
      %86 = vector.broadcast %cst_47 : f32 to vector<4x8x8xf32>
      %87 = arith.mulf %85, %86 : vector<4x8x8xf32>
      %88 = tpu.iota {dimensions = array<i32: 1>} : vector<1x8xi32>
      %c0_i32_48 = arith.constant 0 : i32
      %89 = vector.broadcast %c0_i32_48 : i32 to vector<1x8xi32>
      %90 = arith.addi %88, %89 : vector<1x8xi32>
      %91 = vector.broadcast %14 : vector<8x1xi32> to vector<8x8xi32>
      %92 = vector.broadcast %90 : vector<1x8xi32> to vector<8x8xi32>
      %93 = arith.cmpi sge, %91, %92 : vector<8x8xi32>
      %94 = vector.shape_cast %93 : vector<8x8xi1> to vector<1x8x8xi1>
      %cst_49 = arith.constant -1.000000e+04 : f32
      %95 = vector.shape_cast %94 : vector<1x8x8xi1> to vector<1x8x8xi1>
      %96 = vector.broadcast %95 : vector<1x8x8xi1> to vector<4x8x8xi1>
      %97 = vector.broadcast %cst_49 : f32 to vector<4x8x8xf32>
      %98 = arith.select %96, %87, %97 : vector<4x8x8xi1>, vector<4x8x8xf32>
      %cst_50 = arith.constant dense<0xFF800000> : vector<4x8xf32>
      %99 = vector.multi_reduction <maximumf>, %98, %cst_50 [2] : vector<4x8x8xf32> to vector<4x8xf32>
      %100 = vector.shape_cast %99 : vector<4x8xf32> to vector<4x8x1xf32>
      %101 = arith.maximumf %82, %100 : vector<4x8x1xf32>
      %102 = arith.subf %82, %101 : vector<4x8x1xf32>
      %103 = math.exp %102 : vector<4x8x1xf32>
      %104 = vector.broadcast %101 : vector<4x8x1xf32> to vector<4x8x8xf32>
      %105 = arith.subf %98, %104 : vector<4x8x8xf32>
      %106 = math.exp %105 : vector<4x8x8xf32>
      %107 = arith.mulf %103, %83 : vector<4x8x1xf32>
      %cst_51 = arith.constant dense<0.000000e+00> : vector<4x8xf32>
      %108 = vector.multi_reduction <add>, %106, %cst_51 [2] : vector<4x8x8xf32> to vector<4x8xf32>
      %109 = vector.shape_cast %108 : vector<4x8xf32> to vector<4x8x1xf32>
      %110 = arith.addf %107, %109 : vector<4x8x1xf32>
      %111 = vector.broadcast %103 : vector<4x8x1xf32> to vector<4x8x8xf32>
      %112 = arith.mulf %111, %84 : vector<4x8x8xf32>
      %113 = arith.truncf %106 : vector<4x8x8xf32> to vector<4x8x8xbf16>
      "tpu.trace_start"() <{level = 10 : i32, message = "hqk,hkd->hqd"}> : () -> ()
      %cst_52 = arith.constant dense<0.000000e+00> : vector<4x8x8xf32>
      %114 = tpu.matmul %113, %81, %cst_52 {dimension_numbers = #tpu.dot_dimension_numbers<[2], [1], [1], [2], [0, 0, 0, 1, 1, 2], [0], [0]>} : vector<4x8x8xbf16>, vector<4x8x8xbf16>, vector<4x8x8xf32> -> vector<4x8x8xf32>
      "tpu.trace_stop"() : () -> ()
      %115 = arith.addf %112, %114 : vector<4x8x8xf32>
      %116 = tpu.reciprocal %110 {approx = true} : vector<4x8x1xf32> -> vector<4x8x1xf32>
      %117 = vector.broadcast %116 : vector<4x8x1xf32> to vector<4x8x8xf32>
      %118 = arith.mulf %115, %117 : vector<4x8x8xf32>
      %119 = tpu.transpose %118, [1, 0, 2] : vector<4x8x8xf32> -> vector<8x4x8xf32>
      %120 = vector.shape_cast %119 : vector<8x4x8xf32> to vector<8x32xf32>
      %121 = arith.truncf %120 : vector<8x32xf32> to vector<8x32xbf16>
      %cst_53 = arith.constant dense<0.000000e+00> : vector<8x32xf32>
      %122 = tpu.matmul %121, %6, %cst_53 {dimension_numbers = #tpu.dot_dimension_numbers<[1], [0], [0], [1], [0, 0, 1, 1], [], []>} : vector<8x32xbf16>, vector<32x32xbf16>, vector<8x32xf32> -> vector<8x32xf32>
      %123 = vector.broadcast %7 : vector<1x32xf32> to vector<8x32xf32>
      %124 = arith.addf %122, %123 : vector<8x32xf32>
      %125 = arith.addf %124, %arg18 : vector<8x32xf32>
      %cst_54 = arith.constant dense<0.000000e+00> : vector<8xf32>
      %126 = vector.multi_reduction <add>, %125, %cst_54 [1] : vector<8x32xf32> to vector<8xf32>
      %127 = vector.shape_cast %126 : vector<8xf32> to vector<8x1xf32>
      %cst_55 = arith.constant 3.200000e+01 : f32
      %128 = vector.broadcast %cst_55 : f32 to vector<8x1xf32>
      %129 = arith.divf %127, %128 : vector<8x1xf32>
      %130 = vector.broadcast %129 : vector<8x1xf32> to vector<8x32xf32>
      %131 = arith.subf %125, %130 : vector<8x32xf32>
      %132 = arith.mulf %131, %131 : vector<8x32xf32>
      %cst_56 = arith.constant dense<0.000000e+00> : vector<8xf32>
      %133 = vector.multi_reduction <add>, %132, %cst_56 [1] : vector<8x32xf32> to vector<8xf32>
      %134 = vector.shape_cast %133 : vector<8xf32> to vector<8x1xf32>
      %cst_57 = arith.constant 3.200000e+01 : f32
      %135 = vector.broadcast %cst_57 : f32 to vector<8x1xf32>
      %136 = arith.divf %134, %135 : vector<8x1xf32>
      %137 = vector.broadcast %129 : vector<8x1xf32> to vector<8x32xf32>
      %138 = arith.subf %125, %137 : vector<8x32xf32>
      %cst_58 = arith.constant 9.99999996E-13 : f32
      %139 = vector.broadcast %cst_58 : f32 to vector<8x1xf32>
      %140 = arith.addf %136, %139 : vector<8x1xf32>
      %141 = math.rsqrt %140 : vector<8x1xf32>
      %142 = vector.broadcast %141 : vector<8x1xf32> to vector<8x32xf32>
      %143 = arith.mulf %138, %142 : vector<8x32xf32>
      %144 = vector.broadcast %8 : vector<1x32xf32> to vector<8x32xf32>
      %145 = arith.mulf %143, %144 : vector<8x32xf32>
      %146 = vector.broadcast %9 : vector<1x32xf32> to vector<8x32xf32>
      %147 = arith.addf %145, %146 : vector<8x32xf32>
      %148 = arith.truncf %147 : vector<8x32xf32> to vector<8x32xbf16>
      %cst_59 = arith.constant dense<0.000000e+00> : vector<8x128xf32>
      %149 = tpu.matmul %148, %10, %cst_59 {dimension_numbers = #tpu.dot_dimension_numbers<[1], [0], [0], [1], [0, 0, 1, 1], [], []>} : vector<8x32xbf16>, vector<32x128xbf16>, vector<8x128xf32> -> vector<8x128xf32>
      %150 = vector.broadcast %11 : vector<1x128xf32> to vector<8x128xf32>
      %151 = arith.addf %149, %150 : vector<8x128xf32>
      %cst_60 = arith.constant 5.000000e-01 : f32
      %152 = vector.broadcast %cst_60 : f32 to vector<8x128xf32>
      %153 = arith.mulf %152, %151 : vector<8x128xf32>
      %cst_61 = arith.constant 0.636619746 : f32
      %154 = math.sqrt %cst_61 : f32
      %cst_62 = arith.constant 4.471500e-02 : f32
      %155 = vector.broadcast %cst_62 : f32 to vector<8x128xf32>
      %156 = arith.mulf %155, %151 : vector<8x128xf32>
      %157 = arith.mulf %156, %151 : vector<8x128xf32>
      %158 = arith.mulf %157, %151 : vector<8x128xf32>
      %159 = arith.addf %151, %158 : vector<8x128xf32>
      %160 = vector.broadcast %154 : f32 to vector<8x128xf32>
      %161 = arith.mulf %160, %159 : vector<8x128xf32>
      %162 = math.tanh %161 : vector<8x128xf32>
      %cst_63 = arith.constant 1.000000e+00 : f32
      %163 = vector.broadcast %cst_63 : f32 to vector<8x128xf32>
      %164 = arith.addf %163, %162 : vector<8x128xf32>
      %165 = arith.mulf %153, %164 : vector<8x128xf32>
      %166 = arith.truncf %165 : vector<8x128xf32> to vector<8x128xbf16>
      %cst_64 = arith.constant dense<0.000000e+00> : vector<8x32xf32>
      %167 = tpu.matmul %166, %12, %cst_64 {dimension_numbers = #tpu.dot_dimension_numbers<[1], [0], [0], [1], [0, 0, 1, 1], [], []>} : vector<8x128xbf16>, vector<128x32xbf16>, vector<8x32xf32> -> vector<8x32xf32>
      %168 = vector.broadcast %13 : vector<1x32xf32> to vector<8x32xf32>
      %169 = arith.addf %167, %168 : vector<8x32xf32>
      %170 = arith.addf %169, %125 : vector<8x32xf32>
      scf.yield %170 : vector<8x32xf32>
    }
    %c0_26 = arith.constant 0 : index
    %c0_27 = arith.constant 0 : index
    %17 = vector.load %arg14[%c0_26, %c0_27] : memref<1x32xf32, #tpu.memory_space<vmem>>, vector<1x32xf32>
    %c0_28 = arith.constant 0 : index
    %c0_29 = arith.constant 0 : index
    %18 = vector.load %arg15[%c0_28, %c0_29] : memref<1x32xf32, #tpu.memory_space<vmem>>, vector<1x32xf32>
    %cst = arith.constant dense<0.000000e+00> : vector<8xf32>
    %19 = vector.multi_reduction <add>, %16, %cst [1] : vector<8x32xf32> to vector<8xf32>
    %20 = vector.shape_cast %19 : vector<8xf32> to vector<8x1xf32>
    %cst_30 = arith.constant 3.200000e+01 : f32
    %21 = vector.broadcast %cst_30 : f32 to vector<8x1xf32>
    %22 = arith.divf %20, %21 : vector<8x1xf32>
    %23 = vector.broadcast %22 : vector<8x1xf32> to vector<8x32xf32>
    %24 = arith.subf %16, %23 : vector<8x32xf32>
    %25 = arith.mulf %24, %24 : vector<8x32xf32>
    %cst_31 = arith.constant dense<0.000000e+00> : vector<8xf32>
    %26 = vector.multi_reduction <add>, %25, %cst_31 [1] : vector<8x32xf32> to vector<8xf32>
    %27 = vector.shape_cast %26 : vector<8xf32> to vector<8x1xf32>
    %cst_32 = arith.constant 3.200000e+01 : f32
    %28 = vector.broadcast %cst_32 : f32 to vector<8x1xf32>
    %29 = arith.divf %27, %28 : vector<8x1xf32>
    %30 = vector.broadcast %22 : vector<8x1xf32> to vector<8x32xf32>
    %31 = arith.subf %16, %30 : vector<8x32xf32>
    %cst_33 = arith.constant 9.99999996E-13 : f32
    %32 = vector.broadcast %cst_33 : f32 to vector<8x1xf32>
    %33 = arith.addf %29, %32 : vector<8x1xf32>
    %34 = math.rsqrt %33 : vector<8x1xf32>
    %35 = vector.broadcast %34 : vector<8x1xf32> to vector<8x32xf32>
    %36 = arith.mulf %31, %35 : vector<8x32xf32>
    %37 = vector.broadcast %17 : vector<1x32xf32> to vector<8x32xf32>
    %38 = arith.mulf %36, %37 : vector<8x32xf32>
    %39 = vector.broadcast %18 : vector<1x32xf32> to vector<8x32xf32>
    %40 = arith.addf %38, %39 : vector<8x32xf32>
    %c0_34 = arith.constant 0 : index
    %c0_35 = arith.constant 0 : index
    %c0_36 = arith.constant 0 : index
    %41 = vector.load %arg16[%c0_34, %c0_35, %c0_36] : memref<1x8x32xf32, #tpu.memory_space<vmem>>, vector<1x8x32xf32>
    %42 = vector.shape_cast %41 : vector<1x8x32xf32> to vector<8x32xf32>
    %43 = vector.shape_cast %40 : vector<8x32xf32> to vector<1x8x32xf32>
    tpu.vector_store %arg16[%c0_34, %c0_35, %c0_36], %43 {strides = array<i32>} : memref<1x8x32xf32, #tpu.memory_space<vmem>>, vector<1x8x32xf32>,
    return
  }
  func.func @transform_0(%arg0: i32) -> (i32, i32, i32) {
    %c0_i32 = arith.constant 0 : i32
    %c0_i32_0 = arith.constant 0 : i32
    %c0_i32_1 = arith.constant 0 : i32
    return %arg0, %c0_i32, %c0_i32_0 : i32, i32, i32
  }
  func.func @transform_1(%arg0: i32) -> (i32, i32) {
    %c0_i32 = arith.constant 0 : i32
    %c0_i32_0 = arith.constant 0 : i32
    %c0_i32_1 = arith.constant 0 : i32
    return %c0_i32, %c0_i32_0 : i32, i32
  }
  func.func @transform_2(%arg0: i32) -> (i32, i32) {
    %c0_i32 = arith.constant 0 : i32
    %c0_i32_0 = arith.constant 0 : i32
    %c0_i32_1 = arith.constant 0 : i32
    return %c0_i32, %c0_i32_0 : i32, i32
  }
  func.func @transform_3(%arg0: i32) -> (i32, i32) {
    %c0_i32 = arith.constant 0 : i32
    %c0_i32_0 = arith.constant 0 : i32
    %c0_i32_1 = arith.constant 0 : i32
    return %c0_i32, %c0_i32_0 : i32, i32
  }
  func.func @transform_4(%arg0: i32) -> (i32, i32) {
    %c0_i32 = arith.constant 0 : i32
    %c0_i32_0 = arith.constant 0 : i32
    %c0_i32_1 = arith.constant 0 : i32
    return %c0_i32, %c0_i32_0 : i32, i32
  }
  func.func @transform_5(%arg0: i32) -> (i32, i32) {
    %c0_i32 = arith.constant 0 : i32
    %c0_i32_0 = arith.constant 0 : i32
    %c0_i32_1 = arith.constant 0 : i32
    return %c0_i32, %c0_i32_0 : i32, i32
  }
  func.func @transform_6(%arg0: i32) -> (i32, i32) {
    %c0_i32 = arith.constant 0 : i32
    %c0_i32_0 = arith.constant 0 : i32
    %c0_i32_1 = arith.constant 0 : i32
    return %c0_i32, %c0_i32_0 : i32, i32
  }
  func.func @transform_7(%arg0: i32) -> (i32, i32) {
    %c0_i32 = arith.constant 0 : i32
    %c0_i32_0 = arith.constant 0 : i32
    %c0_i32_1 = arith.constant 0 : i32
    return %c0_i32, %c0_i32_0 : i32, i32
  }
  func.func @transform_8(%arg0: i32) -> (i32, i32) {
    %c0_i32 = arith.constant 0 : i32
    %c0_i32_0 = arith.constant 0 : i32
    %c0_i32_1 = arith.constant 0 : i32
    return %c0_i32, %c0_i32_0 : i32, i32
  }
  func.func @transform_9(%arg0: i32) -> (i32, i32) {
    %c0_i32 = arith.constant 0 : i32
    %c0_i32_0 = arith.constant 0 : i32
    %c0_i32_1 = arith.constant 0 : i32
    return %c0_i32, %c0_i32_0 : i32, i32
  }
  func.func @transform_10(%arg0: i32) -> (i32, i32) {
    %c0_i32 = arith.constant 0 : i32
    %c0_i32_0 = arith.constant 0 : i32
    %c0_i32_1 = arith.constant 0 : i32
    return %c0_i32, %c0_i32_0 : i32, i32
  }
  func.func @transform_11(%arg0: i32) -> (i32, i32) {
    %c0_i32 = arith.constant 0 : i32
    %c0_i32_0 = arith.constant 0 : i32
    %c0_i32_1 = arith.constant 0 : i32
    return %c0_i32, %c0_i32_0 : i32, i32
  }
  func.func @transform_12(%arg0: i32) -> (i32, i32) {
    %c0_i32 = arith.constant 0 : i32
    %c0_i32_0 = arith.constant 0 : i32
    %c0_i32_1 = arith.constant 0 : i32
    return %c0_i32, %c0_i32_0 : i32, i32
  }
  func.func @transform_13(%arg0: i32) -> (i32, i32) {
    %c0_i32 = arith.constant 0 : i32
    %c0_i32_0 = arith.constant 0 : i32
    %c0_i32_1 = arith.constant 0 : i32
    return %c0_i32, %c0_i32_0 : i32, i32
  }
  func.func @transform_14(%arg0: i32) -> (i32, i32) {
    %c0_i32 = arith.constant 0 : i32
    %c0_i32_0 = arith.constant 0 : i32
    %c0_i32_1 = arith.constant 0 : i32
    return %c0_i32, %c0_i32_0 : i32, i32
  }
  func.func @transform_15(%arg0: i32) -> (i32, i32, i32) {
    %c0_i32 = arith.constant 0 : i32
    %c0_i32_0 = arith.constant 0 : i32
    %c0_i32_1 = arith.constant 0 : i32
    return %arg0, %c0_i32, %c0_i32_0 : i32, i32, i32
  }
}

</mosaic_0001>

<llo_original>
// kernel: body_expert_forward.1
$region0: #{body_expert_forward.1}
  #allocation0 [shape = 'u32[]', space=smem, size = 0x4, offset = 0x4, fixed_abs, tag = 'smem constant byte address 0x4 - core index']
  #allocation1 [shape = 'u32[144,128]{1,0:T(1,128)}', space=vmem, size = 0x12000, scoped, tag = 'internal scratch']
  %s0 = inlined_call_operand.hbm [shape: f32[2,8,32], index: 0, kind: input, shape index: {}, may-alias: {0,15}]
  %s1 = inlined_call_operand.vmem [shape: f32[1,32], index: 1, kind: input, shape index: {}]
  %s2 = inlined_call_operand.vmem [shape: f32[1,32], index: 2, kind: input, shape index: {}]
  %s3 = inlined_call_operand.vmem [shape: bf16[32,96], index: 3, kind: input, shape index: {}]
  %s4 = inlined_call_operand.vmem [shape: f32[1,96], index: 4, kind: input, shape index: {}]
  %s5 = inlined_call_operand.vmem [shape: bf16[32,32], index: 5, kind: input, shape index: {}]
  %s6 = inlined_call_operand.vmem [shape: f32[1,32], index: 6, kind: input, shape index: {}]
  %s7 = inlined_call_operand.vmem [shape: f32[1,32], index: 7, kind: input, shape index: {}]
  %s8 = inlined_call_operand.vmem [shape: f32[1,32], index: 8, kind: input, shape index: {}]
  %s9 = inlined_call_operand.vmem [shape: bf16[32,128], index: 9, kind: input, shape index: {}]
  %s10 = inlined_call_operand.vmem [shape: f32[1,128], index: 10, kind: input, shape index: {}]
  %s11 = inlined_call_operand.vmem [shape: bf16[128,32], index: 11, kind: input, shape index: {}]
  %s12 = inlined_call_operand.vmem [shape: f32[1,32], index: 12, kind: input, shape index: {}]
  %s13 = inlined_call_operand.vmem [shape: f32[1,32], index: 13, kind: input, shape index: {}]
  %s14 = inlined_call_operand.vmem [shape: f32[1,32], index: 14, kind: input, shape index: {}]
  %s15 = inlined_call_operand.hbm [shape: f32[2,8,32], index: 15, kind: output, shape index: {}, may-alias: {0,15}]
  %s16 = sld [smem:[#allocation0]]
  $region104: #{body_expert_forward.1} parent=0
    _
  %s18 = ssub.s32 1, %s16
  %s19 = scalar_select 0, %s18, %s16
  $region1: #{body_expert_forward.1} parent=0
    #allocation2 [shape = 'u8[8192]{0}', space=vmem, size = 0x2000, scoped, tag = 'input window, operand 0']
    #allocation3 [shape = 's32[2]{0}', space=sflag, size = 0x8, scoped, tag = 'scoped memory for body_expert_forward.1']
    #allocation4 [shape = 's32[2]{0}', space=sflag, size = 0x8, scoped, tag = 'scoped memory for body_expert_forward.1']
    #allocation5 [shape = 'u8[8192]{0}', space=vmem, size = 0x2000, scoped, tag = 'output window, operand 0']
    %20 = vsyncpa [#allocation3], 0
    %s21 = scalar_lea.sflag [#allocation3], 1
    %22 = vsyncpa %s21, 0
    %23 = vsyncpa [#allocation4], 0
    %s24 = scalar_lea.sflag [#allocation4], 1
    %25 = vsyncpa %s24, 0
    loop: start=0, step=1, limit=4
    $region2: #{body_expert_forward.1} parent=1 // loop_pre_header
      _
    $region3: #{body_expert_forward.1} parent=1 // loop_header
      %s27 = sphi 0, %s31
      %p28 = scmp.ge.s32.totalorder %s27, 4
      %s37 = sphi 0, %s39
      %s40 = sphi 0, %s37
      %s41 = sphi 0, %s40
      %s57 = sphi 0, %s41
      %s61 = sphi 0, %s61
      %s63 = sphi 0, %s61
      %s64 = sphi 0, %s63
      %s78 = sphi 0, %s64
      %s82 = sphi 0, %s82
      %s84 = sphi 0, %s82
      %s85 = sphi 0, %s84
      %s99 = sphi 0, %s85
      %s103 = sphi 0, %s103
      %s105 = sphi 0, %s103
      %s106 = sphi 0, %s105
      %s120 = sphi 0, %s106
      %s124 = sphi 0, %s124
      %s126 = sphi 0, %s124
      %s127 = sphi 0, %s126
      %s141 = sphi 0, %s127
      %s145 = sphi 0, %s145
      %s147 = sphi 0, %s145
      %s148 = sphi 0, %s147
      %s162 = sphi 0, %s148
      %s166 = sphi 0, %s166
      %s168 = sphi 0, %s166
      %s169 = sphi 0, %s168
      %s183 = sphi 0, %s169
      %s187 = sphi 0, %s187
      %s189 = sphi 0, %s187
      %s190 = sphi 0, %s189
      %s204 = sphi 0, %s190
      %s208 = sphi 0, %s208
      %s210 = sphi 0, %s208
      %s211 = sphi 0, %s210
      %s225 = sphi 0, %s211
      %s229 = sphi 0, %s229
      %s231 = sphi 0, %s229
      %s232 = sphi 0, %s231
      %s246 = sphi 0, %s232
      %s250 = sphi 0, %s250
      %s252 = sphi 0, %s250
      %s253 = sphi 0, %s252
      %s267 = sphi 0, %s253
      %s271 = sphi 0, %s271
      %s273 = sphi 0, %s271
      %s274 = sphi 0, %s273
      %s288 = sphi 0, %s274
      %s292 = sphi 0, %s292
      %s294 = sphi 0, %s292
      %s295 = sphi 0, %s294
      %s309 = sphi 0, %s295
      %s313 = sphi 0, %s313
      %s315 = sphi 0, %s313
      %s316 = sphi 0, %s315
      %s330 = sphi 0, %s316
      %s334 = sphi 0, %s334
      %s336 = sphi 0, %s334
      %s337 = sphi 0, %s336
      %s351 = sphi 0, %s337
      %s357 = sphi 0, %s359
      %s360 = sphi 0, %s357
      %s361 = sphi 0, %s360
      %s377 = sphi 0, %s361
    $region4: #{body_expert_forward.1} parent=1 // loop_header_branch
      %30 = sbr.rel (%p28) target = $region8
    $region5: #{body_expert_forward.1} parent=1 // loop_body
      %s32 = ssub.s32 %s27, 1
      %s33 = ssub.s32 %s27, 2
      %s34 = sadd.s32 %s27, 1
      %s35 = ssub.s32 %s27, %s34
      %p36 = scmp.eq.s32.totalorder %s35, 0
      %s38 = sadd.s32 %s37, 1
      %s39 = scalar_select %p36, %s37, %s38
      %p42 = pneg %p36
      %p43 = scmp.eq.s32.totalorder %s27, 1
      %p44 = por %p42, %p43
      %p45 = scmp.ne.s32.totalorder %s37, %s40
      %p46 = scmp.eq.s32.totalorder %s27, 0
      %p47 = por %p45, %p46
      %p48 = scmp.ne.s32.totalorder %s37, %s40
      %p49 = scmp.eq.s32.totalorder %s32, 1
      %p50 = por %p48, %p49
      %p51 = scmp.ne.s32.totalorder %s40, %s41
      %p52 = scmp.eq.s32.totalorder %s32, 0
      %p53 = por %p51, %p52
      %p54 = scmp.ne.s32.totalorder %s40, %s41
      %p55 = scmp.eq.s32.totalorder %s33, 1
      %p56 = por %p54, %p55
      %p58 = scmp.ne.s32.totalorder %s41, %s57
      %p59 = scmp.eq.s32.totalorder %s33, 0
      %p60 = por %p58, %p59
      %s62 = sadd.s32 %s61, 1
      %p65 = scmp.eq.s32.totalorder %s27, 1
      %p66 = scmp.ne.s32.totalorder %s61, %s63
      %p67 = scmp.eq.s32.totalorder %s27, 0
      %p68 = por %p66, %p67
      %p69 = scmp.ne.s32.totalorder %s61, %s63
      %p70 = scmp.eq.s32.totalorder %s32, 1
      %p71 = por %p69, %p70
      %p72 = scmp.ne.s32.totalorder %s63, %s64
      %p73 = scmp.eq.s32.totalorder %s32, 0
      %p74 = por %p72, %p73
      %p75 = scmp.ne.s32.totalorder %s63, %s64
      %p76 = scmp.eq.s32.totalorder %s33, 1
      %p77 = por %p75, %p76
      %p79 = scmp.ne.s32.totalorder %s64, %s78
      %p80 = scmp.eq.s32.totalorder %s33, 0
      %p81 = por %p79, %p80
      %s83 = sadd.s32 %s82, 1
      %p86 = scmp.eq.s32.totalorder %s27, 1
      %p87 = scmp.ne.s32.totalorder %s82, %s84
      %p88 = scmp.eq.s32.totalorder %s27, 0
      %p89 = por %p87, %p88
      %p90 = scmp.ne.s32.totalorder %s82, %s84
      %p91 = scmp.eq.s32.totalorder %s32, 1
      %p92 = por %p90, %p91
      %p93 = scmp.ne.s32.totalorder %s84, %s85
      %p94 = scmp.eq.s32.totalorder %s32, 0
      %p95 = por %p93, %p94
      %p96 = scmp.ne.s32.totalorder %s84, %s85
      %p97 = scmp.eq.s32.totalorder %s33, 1
      %p98 = por %p96, %p97
      %p100 = scmp.ne.s32.totalorder %s85, %s99
      %p101 = scmp.eq.s32.totalorder %s33, 0
      %p102 = por %p100, %p101
      %s104 = sadd.s32 %s103, 1
      %p107 = scmp.eq.s32.totalorder %s27, 1
      %p108 = scmp.ne.s32.totalorder %s103, %s105
      %p109 = scmp.eq.s32.totalorder %s27, 0
      %p110 = por %p108, %p109
      %p111 = scmp.ne.s32.totalorder %s103, %s105
      %p112 = scmp.eq.s32.totalorder %s32, 1
      %p113 = por %p111, %p112
      %p114 = scmp.ne.s32.totalorder %s105, %s106
      %p115 = scmp.eq.s32.totalorder %s32, 0
      %p116 = por %p114, %p115
      %p117 = scmp.ne.s32.totalorder %s105, %s106
      %p118 = scmp.eq.s32.totalorder %s33, 1
      %p119 = por %p117, %p118
      %p121 = scmp.ne.s32.totalorder %s106, %s120
      %p122 = scmp.eq.s32.totalorder %s33, 0
      %p123 = por %p121, %p122
      %s125 = sadd.s32 %s124, 1
      %p128 = scmp.eq.s32.totalorder %s27, 1
      %p129 = scmp.ne.s32.totalorder %s124, %s126
      %p130 = scmp.eq.s32.totalorder %s27, 0
      %p131 = por %p129, %p130
      %p132 = scmp.ne.s32.totalorder %s124, %s126
      %p133 = scmp.eq.s32.totalorder %s32, 1
      %p134 = por %p132, %p133
      %p135 = scmp.ne.s32.totalorder %s126, %s127
      %p136 = scmp.eq.s32.totalorder %s32, 0
      %p137 = por %p135, %p136
      %p138 = scmp.ne.s32.totalorder %s126, %s127
      %p139 = scmp.eq.s32.totalorder %s33, 1
      %p140 = por %p138, %p139
      %p142 = scmp.ne.s32.totalorder %s127, %s141
      %p143 = scmp.eq.s32.totalorder %s33, 0
      %p144 = por %p142, %p143
      %s146 = sadd.s32 %s145, 1
      %p149 = scmp.eq.s32.totalorder %s27, 1
      %p150 = scmp.ne.s32.totalorder %s145, %s147
      %p151 = scmp.eq.s32.totalorder %s27, 0
      %p152 = por %p150, %p151
      %p153 = scmp.ne.s32.totalorder %s145, %s147
      %p154 = scmp.eq.s32.totalorder %s32, 1
      %p155 = por %p153, %p154
      %p156 = scmp.ne.s32.totalorder %s147, %s148
      %p157 = scmp.eq.s32.totalorder %s32, 0
      %p158 = por %p156, %p157
      %p159 = scmp.ne.s32.totalorder %s147, %s148
      %p160 = scmp.eq.s32.totalorder %s33, 1
      %p161 = por %p159, %p160
      %p163 = scmp.ne.s32.totalorder %s148, %s162
      %p164 = scmp.eq.s32.totalorder %s33, 0
      %p165 = por %p163, %p164
      %s167 = sadd.s32 %s166, 1
      %p170 = scmp.eq.s32.totalorder %s27, 1
      %p171 = scmp.ne.s32.totalorder %s166, %s168
      %p172 = scmp.eq.s32.totalorder %s27, 0
      %p173 = por %p171, %p172
      %p174 = scmp.ne.s32.totalorder %s166, %s168
      %p175 = scmp.eq.s32.totalorder %s32, 1
      %p176 = por %p174, %p175
      %p177 = scmp.ne.s32.totalorder %s168, %s169
      %p178 = scmp.eq.s32.totalorder %s32, 0
      %p179 = por %p177, %p178
      %p180 = scmp.ne.s32.totalorder %s168, %s169
      %p181 = scmp.eq.s32.totalorder %s33, 1
      %p182 = por %p180, %p181
      %p184 = scmp.ne.s32.totalorder %s169, %s183
      %p185 = scmp.eq.s32.totalorder %s33, 0
      %p186 = por %p184, %p185
      %s188 = sadd.s32 %s187, 1
      %p191 = scmp.eq.s32.totalorder %s27, 1
      %p192 = scmp.ne.s32.totalorder %s187, %s189
      %p193 = scmp.eq.s32.totalorder %s27, 0
      %p194 = por %p192, %p193
      %p195 = scmp.ne.s32.totalorder %s187, %s189
      %p196 = scmp.eq.s32.totalorder %s32, 1
      %p197 = por %p195, %p196
      %p198 = scmp.ne.s32.totalorder %s189, %s190
      %p199 = scmp.eq.s32.totalorder %s32, 0
      %p200 = por %p198, %p199
      %p201 = scmp.ne.s32.totalorder %s189, %s190
      %p202 = scmp.eq.s32.totalorder %s33, 1
      %p203 = por %p201, %p202
      %p205 = scmp.ne.s32.totalorder %s190, %s204
      %p206 = scmp.eq.s32.totalorder %s33, 0
      %p207 = por %p205, %p206
      %s209 = sadd.s32 %s208, 1
      %p212 = scmp.eq.s32.totalorder %s27, 1
      %p213 = scmp.ne.s32.totalorder %s208, %s210
      %p214 = scmp.eq.s32.totalorder %s27, 0
      %p215 = por %p213, %p214
      %p216 = scmp.ne.s32.totalorder %s208, %s210
      %p217 = scmp.eq.s32.totalorder %s32, 1
      %p218 = por %p216, %p217
      %p219 = scmp.ne.s32.totalorder %s210, %s211
      %p220 = scmp.eq.s32.totalorder %s32, 0
      %p221 = por %p219, %p220
      %p222 = scmp.ne.s32.totalorder %s210, %s211
      %p223 = scmp.eq.s32.totalorder %s33, 1
      %p224 = por %p222, %p223
      %p226 = scmp.ne.s32.totalorder %s211, %s225
      %p227 = scmp.eq.s32.totalorder %s33, 0
      %p228 = por %p226, %p227
      %s230 = sadd.s32 %s229, 1
      %p233 = scmp.eq.s32.totalorder %s27, 1
      %p234 = scmp.ne.s32.totalorder %s229, %s231
      %p235 = scmp.eq.s32.totalorder %s27, 0
      %p236 = por %p234, %p235
      %p237 = scmp.ne.s32.totalorder %s229, %s231
      %p238 = scmp.eq.s32.totalorder %s32, 1
      %p239 = por %p237, %p238
      %p240 = scmp.ne.s32.totalorder %s231, %s232
      %p241 = scmp.eq.s32.totalorder %s32, 0
      %p242 = por %p240, %p241
      %p243 = scmp.ne.s32.totalorder %s231, %s232
      %p244 = scmp.eq.s32.totalorder %s33, 1
      %p245 = por %p243, %p244
      %p247 = scmp.ne.s32.totalorder %s232, %s246
      %p248 = scmp.eq.s32.totalorder %s33, 0
      %p249 = por %p247, %p248
      %s251 = sadd.s32 %s250, 1
      %p254 = scmp.eq.s32.totalorder %s27, 1
      %p255 = scmp.ne.s32.totalorder %s250, %s252
      %p256 = scmp.eq.s32.totalorder %s27, 0
      %p257 = por %p255, %p256
      %p258 = scmp.ne.s32.totalorder %s250, %s252
      %p259 = scmp.eq.s32.totalorder %s32, 1
      %p260 = por %p258, %p259
      %p261 = scmp.ne.s32.totalorder %s252, %s253
      %p262 = scmp.eq.s32.totalorder %s32, 0
      %p263 = por %p261, %p262
      %p264 = scmp.ne.s32.totalorder %s252, %s253
      %p265 = scmp.eq.s32.totalorder %s33, 1
      %p266 = por %p264, %p265
      %p268 = scmp.ne.s32.totalorder %s253, %s267
      %p269 = scmp.eq.s32.totalorder %s33, 0
      %p270 = por %p268, %p269
      %s272 = sadd.s32 %s271, 1
      %p275 = scmp.eq.s32.totalorder %s27, 1
      %p276 = scmp.ne.s32.totalorder %s271, %s273
      %p277 = scmp.eq.s32.totalorder %s27, 0
      %p278 = por %p276, %p277
      %p279 = scmp.ne.s32.totalorder %s271, %s273
      %p280 = scmp.eq.s32.totalorder %s32, 1
      %p281 = por %p279, %p280
      %p282 = scmp.ne.s32.totalorder %s273, %s274
      %p283 = scmp.eq.s32.totalorder %s32, 0
      %p284 = por %p282, %p283
      %p285 = scmp.ne.s32.totalorder %s273, %s274
      %p286 = scmp.eq.s32.totalorder %s33, 1
      %p287 = por %p285, %p286
      %p289 = scmp.ne.s32.totalorder %s274, %s288
      %p290 = scmp.eq.s32.totalorder %s33, 0
      %p291 = por %p289, %p290
      %s293 = sadd.s32 %s292, 1
      %p296 = scmp.eq.s32.totalorder %s27, 1
      %p297 = scmp.ne.s32.totalorder %s292, %s294
      %p298 = scmp.eq.s32.totalorder %s27, 0
      %p299 = por %p297, %p298
      %p300 = scmp.ne.s32.totalorder %s292, %s294
      %p301 = scmp.eq.s32.totalorder %s32, 1
      %p302 = por %p300, %p301
      %p303 = scmp.ne.s32.totalorder %s294, %s295
      %p304 = scmp.eq.s32.totalorder %s32, 0
      %p305 = por %p303, %p304
      %p306 = scmp.ne.s32.totalorder %s294, %s295
      %p307 = scmp.eq.s32.totalorder %s33, 1
      %p308 = por %p306, %p307
      %p310 = scmp.ne.s32.totalorder %s295, %s309
      %p311 = scmp.eq.s32.totalorder %s33, 0
      %p312 = por %p310, %p311
      %s314 = sadd.s32 %s313, 1
      %p317 = scmp.eq.s32.totalorder %s27, 1
      %p318 = scmp.ne.s32.totalorder %s313, %s315
      %p319 = scmp.eq.s32.totalorder %s27, 0
      %p320 = por %p318, %p319
      %p321 = scmp.ne.s32.totalorder %s313, %s315
      %p322 = scmp.eq.s32.totalorder %s32, 1
      %p323 = por %p321, %p322
      %p324 = scmp.ne.s32.totalorder %s315, %s316
      %p325 = scmp.eq.s32.totalorder %s32, 0
      %p326 = por %p324, %p325
      %p327 = scmp.ne.s32.totalorder %s315, %s316
      %p328 = scmp.eq.s32.totalorder %s33, 1
      %p329 = por %p327, %p328
      %p331 = scmp.ne.s32.totalorder %s316, %s330
      %p332 = scmp.eq.s32.totalorder %s33, 0
      %p333 = por %p331, %p332
      %s335 = sadd.s32 %s334, 1
      %p338 = scmp.eq.s32.totalorder %s27, 1
      %p339 = scmp.ne.s32.totalorder %s334, %s336
      %p340 = scmp.eq.s32.totalorder %s27, 0
      %p341 = por %p339, %p340
      %p342 = scmp.ne.s32.totalorder %s334, %s336
      %p343 = scmp.eq.s32.totalorder %s32, 1
      %p344 = por %p342, %p343
      %p345 = scmp.ne.s32.totalorder %s336, %s337
      %p346 = scmp.eq.s32.totalorder %s32, 0
      %p347 = por %p345, %p346
      %p348 = scmp.ne.s32.totalorder %s336, %s337
      %p349 = scmp.eq.s32.totalorder %s33, 1
      %p350 = por %p348, %p349
      %p352 = scmp.ne.s32.totalorder %s337, %s351
      %p353 = scmp.eq.s32.totalorder %s33, 0
      %p354 = por %p352, %p353
      %s355 = ssub.s32 %s27, %s34
      %p356 = scmp.eq.s32.totalorder %s355, 0
      %s358 = sadd.s32 %s357, 1
      %s359 = scalar_select %p356, %s357, %s358
      %p362 = pneg %p356
      %p363 = scmp.eq.s32.totalorder %s27, 1
      %p364 = por %p362, %p363
      %p365 = scmp.ne.s32.totalorder %s357, %s360
      %p366 = scmp.eq.s32.totalorder %s27, 0
      %p367 = por %p365, %p366
      %p368 = scmp.ne.s32.totalorder %s357, %s360
      %p369 = scmp.eq.s32.totalorder %s32, 1
      %p370 = por %p368, %p369
      %p371 = scmp.ne.s32.totalorder %s360, %s361
      %p372 = scmp.eq.s32.totalorder %s32, 0
      %p373 = por %p371, %p372
      %p374 = scmp.ne.s32.totalorder %s360, %s361
      %p375 = scmp.eq.s32.totalorder %s33, 1
      %p376 = por %p374, %p375
      %p378 = scmp.ne.s32.totalorder %s361, %s377
      %p379 = scmp.eq.s32.totalorder %s33, 0
      %p380 = por %p378, %p379
      %p381 = scmp.le.s32.totalorder 1, %s27
      %p382 = scmp.lt.s32.totalorder %s27, 3
      %p383 = pnand %p381, %p382
      %p384 = pneg %p383
      // Predicated region
      $region9: #{body_expert_forward.1} parent=5 // pred_check
        _
      $region10: #{body_expert_forward.1} parent=5 // pred_check_branch
        %386 = sbr.rel (%p383) target = $region12
      $region11: #{body_expert_forward.1} parent=5 // pred_region
        %s387 = ssub.s32 %s27, 1
        // Predicated region
        $region13: #{body_expert_forward.1} parent=11 // pred_check
          %p388 = pneg %p74
        $region14: #{body_expert_forward.1} parent=11 // pred_check_branch
          %390 = sbr.rel (%p388) target = $region16
        $region15: #{body_expert_forward.1} parent=11 // pred_region
          _
        $region16: #{body_expert_forward.1} parent=11 // pred_fallthru
          _
        // Predicated region
        $region17: #{body_expert_forward.1} parent=11 // pred_check
          %p391 = pneg %p95
        $region18: #{body_expert_forward.1} parent=11 // pred_check_branch
          %393 = sbr.rel (%p391) target = $region20
        $region19: #{body_expert_forward.1} parent=11 // pred_region
          _
        $region20: #{body_expert_forward.1} parent=11 // pred_fallthru
          _
        // Predicated region
        $region21: #{body_expert_forward.1} parent=11 // pred_check
          %p394 = pneg %p116
        $region22: #{body_expert_forward.1} parent=11 // pred_check_branch
          %396 = sbr.rel (%p394) target = $region24
        $region23: #{body_expert_forward.1} parent=11 // pred_region
          _
        $region24: #{body_expert_forward.1} parent=11 // pred_fallthru
          _
        // Predicated region
        $region25: #{body_expert_forward.1} parent=11 // pred_check
          %p397 = pneg %p137
        $region26: #{body_expert_forward.1} parent=11 // pred_check_branch
          %399 = sbr.rel (%p397) target = $region28
        $region27: #{body_expert_forward.1} parent=11 // pred_region
          _
        $region28: #{body_expert_forward.1} parent=11 // pred_fallthru
          _
        // Predicated region
        $region29: #{body_expert_forward.1} parent=11 // pred_check
          %p400 = pneg %p158
        $region30: #{body_expert_forward.1} parent=11 // pred_check_branch
          %402 = sbr.rel (%p400) target = $region32
        $region31: #{body_expert_forward.1} parent=11 // pred_region
          _
        $region32: #{body_expert_forward.1} parent=11 // pred_fallthru
          _
        // Predicated region
        $region33: #{body_expert_forward.1} parent=11 // pred_check
          %p403 = pneg %p179
        $region34: #{body_expert_forward.1} parent=11 // pred_check_branch
          %405 = sbr.rel (%p403) target = $region36
        $region35: #{body_expert_forward.1} parent=11 // pred_region
          _
        $region36: #{body_expert_forward.1} parent=11 // pred_fallthru
          _
        // Predicated region
        $region37: #{body_expert_forward.1} parent=11 // pred_check
          %p406 = pneg %p200
        $region38: #{body_expert_forward.1} parent=11 // pred_check_branch
          %408 = sbr.rel (%p406) target = $region40
        $region39: #{body_expert_forward.1} parent=11 // pred_region
          _
        $region40: #{body_expert_forward.1} parent=11 // pred_fallthru
          _
        // Predicated region
        $region41: #{body_expert_forward.1} parent=11 // pred_check
          %p409 = pneg %p221
        $region42: #{body_expert_forward.1} parent=11 // pred_check_branch
          %411 = sbr.rel (%p409) target = $region44
        $region43: #{body_expert_forward.1} parent=11 // pred_region
          _
        $region44: #{body_expert_forward.1} parent=11 // pred_fallthru
          _
        // Predicated region
        $region45: #{body_expert_forward.1} parent=11 // pred_check
          %p412 = pneg %p242
        $region46: #{body_expert_forward.1} parent=11 // pred_check_branch
          %414 = sbr.rel (%p412) target = $region48
        $region47: #{body_expert_forward.1} parent=11 // pred_region
          _
        $region48: #{body_expert_forward.1} parent=11 // pred_fallthru
          _
        // Predicated region
        $region49: #{body_expert_forward.1} parent=11 // pred_check
          %p415 = pneg %p263
        $region50: #{body_expert_forward.1} parent=11 // pred_check_branch
          %417 = sbr.rel (%p415) target = $region52
        $region51: #{body_expert_forward.1} parent=11 // pred_region
          _
        $region52: #{body_expert_forward.1} parent=11 // pred_fallthru
          _
        // Predicated region
        $region53: #{body_expert_forward.1} parent=11 // pred_check
          %p418 = pneg %p284
        $region54: #{body_expert_forward.1} parent=11 // pred_check_branch
          %420 = sbr.rel (%p418) target = $region56
        $region55: #{body_expert_forward.1} parent=11 // pred_region
          _
        $region56: #{body_expert_forward.1} parent=11 // pred_fallthru
          _
        // Predicated region
        $region57: #{body_expert_forward.1} parent=11 // pred_check
          %p421 = pneg %p305
        $region58: #{body_expert_forward.1} parent=11 // pred_check_branch
          %423 = sbr.rel (%p421) target = $region60
        $region59: #{body_expert_forward.1} parent=11 // pred_region
          _
        $region60: #{body_expert_forward.1} parent=11 // pred_fallthru
          _
        // Predicated region
        $region61: #{body_expert_forward.1} parent=11 // pred_check
          %p424 = pneg %p326
        $region62: #{body_expert_forward.1} parent=11 // pred_check_branch
          %426 = sbr.rel (%p424) target = $region64
        $region63: #{body_expert_forward.1} parent=11 // pred_region
          _
        $region64: #{body_expert_forward.1} parent=11 // pred_fallthru
          _
        // Predicated region
        $region65: #{body_expert_forward.1} parent=11 // pred_check
          %p427 = pneg %p347
        $region66: #{body_expert_forward.1} parent=11 // pred_check_branch
          %429 = sbr.rel (%p427) target = $region68
        $region67: #{body_expert_forward.1} parent=11 // pred_region
          _
        $region68: #{body_expert_forward.1} parent=11 // pred_fallthru
          _
      $region12: #{body_expert_forward.1} parent=5 // pred_fallthru
        _
      %p430 = scmp.lt.s32.totalorder %s27, 2
      // Predicated region
      $region69: #{body_expert_forward.1} parent=5 // pred_check
        %p431 = pneg %p430
      $region70: #{body_expert_forward.1} parent=5 // pred_check_branch
        %433 = sbr.rel (%p431) target = $region72
      $region71: #{body_expert_forward.1} parent=5 // pred_region
        // Predicated region
        $region73: #{body_expert_forward.1} parent=71 // pred_check
          %p434 = pneg %p47
        $region74: #{body_expert_forward.1} parent=71 // pred_check_branch
          %436 = sbr.rel (%p434) target = $region76
        $region75: #{body_expert_forward.1} parent=71 // pred_region
          %s437 = sand.u32 %s37, 1
          %s438 = scalar_lea.sflag [#allocation3], %s437
          %s439 = sand.u32 %s37, 1
          %s440 = smul.addr %s439, 8
          %s441 = scalar_lea.vmem [#allocation2], %s440
          %s443 = ssub.s32 128, 128
          %444 = vsyncadd %s438, %s443
          %s445 = smul.addr %s27, 128
          %s446 = scalar_lea.hbm %s0, %s445
          %s448 = sshll.u32 %s441, 4
          %s449 = int_to_ptr.vmem [resolvable:$true] %s448
          %451 = dma.hbm_to_vmem [thread:$0]  %s446, 128, %s449, %s438
        $region76: #{body_expert_forward.1} parent=71 // pred_fallthru
          _
      $region72: #{body_expert_forward.1} parent=5 // pred_fallthru
        _
      %p452 = scmp.le.s32.totalorder 1, %s27
      %p453 = scmp.lt.s32.totalorder %s27, 3
      %p454 = pnand %p452, %p453
      %p455 = pneg %p454
      // Predicated region
      $region77: #{body_expert_forward.1} parent=5 // pred_check
        _
      $region78: #{body_expert_forward.1} parent=5 // pred_check_branch
        %457 = sbr.rel (%p454) target = $region80
      $region79: #{body_expert_forward.1} parent=5 // pred_region
        %s458 = ssub.s32 %s27, 1
        %s459 = sand.u32 %s40, 1
        %s460 = scalar_lea.sflag [#allocation3], %s459
        %s461 = sand.u32 %s40, 1
        %s462 = smul.addr %s461, 8
        %s463 = scalar_lea.vmem [#allocation2], %s462
        // Predicated region
        $region81: #{body_expert_forward.1} parent=79 // pred_check
          %p464 = pneg %p53
        $region82: #{body_expert_forward.1} parent=79 // pred_check_branch
          %466 = sbr.rel (%p464) target = $region84
        $region83: #{body_expert_forward.1} parent=79 // pred_region
          %467 = dma.done %s460, 128
        $region84: #{body_expert_forward.1} parent=79 // pred_fallthru
          _
        %s468 = sand.u32 %s40, 1
        %s469 = scalar_lea.sflag [#allocation3], %s468
        %s470 = sand.u32 %s40, 1
        %s471 = smul.addr %s470, 8
        %s472 = scalar_lea.vmem [#allocation2], %s471
        %p473 = pneg %p53
        %p474 = pneg %p50
        %p475 = pneg %p74
        %p476 = pneg %p71
        %p477 = pneg %p95
        %p478 = pneg %p92
        %p479 = pneg %p116
        %p480 = pneg %p113
        %p481 = pneg %p137
        %p482 = pneg %p134
        %p483 = pneg %p158
        %p484 = pneg %p155
        %p485 = pneg %p179
        %p486 = pneg %p176
        %p487 = pneg %p200
        %p488 = pneg %p197
        %p489 = pneg %p221
        %p490 = pneg %p218
        %p491 = pneg %p242
        %p492 = pneg %p239
        %p493 = pneg %p263
        %p494 = pneg %p260
        %p495 = pneg %p284
        %p496 = pneg %p281
        %p497 = pneg %p305
        %p498 = pneg %p302
        %p499 = pneg %p326
        %p500 = pneg %p323
        %p501 = pneg %p347
        %p502 = pneg %p344
        %p503 = pneg %p373
        %p504 = pneg %p370
        %s505 = sand.u32 %s360, 1
        %s506 = scalar_lea.sflag [#allocation4], %s505
        %s507 = sand.u32 %s360, 1
        %s508 = smul.addr %s507, 8
        %s509 = scalar_lea.vmem [#allocation5], %s508
        %v511 = vld [vmem:[%s463] sm:$0xff]
        %v512 = vld [vmem:[%s1] sm:$0x1]
        %v513 = vld [vmem:[%s2] sm:$0x1]
        %v514 = vld [vmem:[%s3] sm:$0xf]
        %v515 = vld [vmem:[%s3 + $0x4] sm:$0xf]
        %v516 = vld [vmem:[%s3 + $0x8] sm:$0xf]
        %v517 = vld [vmem:[%s3 + $0xc] sm:$0xf]
        %v518 = vld [vmem:[%s4] sm:$0x1]
        %v519 = vld [vmem:[%s5] sm:$0xf]
        %v520 = vld [vmem:[%s5 + $0x4] sm:$0xf]
        %v521 = vld [vmem:[%s5 + $0x8] sm:$0xf]
        %v522 = vld [vmem:[%s5 + $0xc] sm:$0xf]
        %v523 = vld [vmem:[%s6] sm:$0x1]
        %v524 = vld [vmem:[%s7] sm:$0x1]
        %v525 = vld [vmem:[%s8] sm:$0x1]
        %v526 = vld [vmem:[%s9] sm:$0xf]
        %v527 = vld [vmem:[%s9 + $0x4] sm:$0xf]
        %v528 = vld [vmem:[%s9 + $0x8] sm:$0xf]
        %v529 = vld [vmem:[%s9 + $0xc] sm:$0xf]
        %v530 = vld [vmem:[%s10] sm:$0x1]
        %v531 = vld [vmem:[%s11] sm:$0xf]
        %v532 = vld [vmem:[%s11 + $0x4] sm:$0xf]
        %v533 = vld [vmem:[%s11 + $0x8] sm:$0xf]
        %v534 = vld [vmem:[%s11 + $0xc] sm:$0xf]
        %v535 = vld [vmem:[%s11 + $0x10] sm:$0xf]
        %v536 = vld [vmem:[%s11 + $0x14] sm:$0xf]
        %v537 = vld [vmem:[%s11 + $0x18] sm:$0xf]
        %v538 = vld [vmem:[%s11 + $0x1c] sm:$0xf]
        %v539 = vld [vmem:[%s11 + $0x20] sm:$0xf]
        %v540 = vld [vmem:[%s11 + $0x24] sm:$0xf]
        %v541 = vld [vmem:[%s11 + $0x28] sm:$0xf]
        %v542 = vld [vmem:[%s11 + $0x2c] sm:$0xf]
        %v543 = vld [vmem:[%s11 + $0x30] sm:$0xf]
        %v544 = vld [vmem:[%s11 + $0x34] sm:$0xf]
        %v545 = vld [vmem:[%s11 + $0x38] sm:$0xf]
        %v546 = vld [vmem:[%s11 + $0x3c] sm:$0xf]
        %v547 = vld [vmem:[%s12] sm:$0x1]
        %v548 = vlaneseq
        %v549 = vshrl.u32 %v548, 7
        loop: start=0, step=1, limit=6
        $region85: #{body_expert_forward.1} parent=79 // loop_pre_header
          _
        $region86: #{body_expert_forward.1} parent=79 // loop_header
          %s551 = sphi 0, %s555
          %p552 = scmp.ge.s32.totalorder %s551, 6
          %v556 = vphi %v511, %v1970
        $region87: #{body_expert_forward.1} parent=79 // loop_header_branch
          %554 = sbr.rel (%p552) target = $region91
        $region88: #{body_expert_forward.1} parent=79 // loop_body
          %vm557 = vcmask 261120
          %v558 = vsel %vm557, %v556, 0.0
          %559 = vadd.xlane.f32.xlu0 %v558
          %v560 = vpop.xlane.xlu0 %559
          %v561 = vrcp.pop 32.0
          %v562 = vmul.f32 %v560, %v561
          %v563 = vsub.f32 %v556, %v562
          %v564 = vmul.f32 %v563, %v563
          %v565 = vsel %vm557, %v564, 0.0
          %566 = vadd.xlane.f32.xlu0 %v565
          %v567 = vpop.xlane.xlu0 %566
          %v568 = vmul.f32 %v567, %v561
          %v569 = vadd.f32 %v568, 1e-12
          %v570 = vrsqrt.pop %v569
          %v571 = vmul.f32 %v563, %v570
          %v573 = vlaneseq
          %v574 = vshrl.u32 %v573, 7
          %v575 = vsub.s32 0, %v574
          %v576 = vrot.slane %v512, %v575
          %v578 = vmul.f32 %v571, %v576
          %v580 = vlaneseq
          %v581 = vshrl.u32 %v580, 7
          %v582 = vsub.s32 0, %v581
          %v583 = vrot.slane %v513, %v582
          %v585 = vadd.f32 %v578, %v583
          %v586 = vpack.c.bf16 %v585, %v585
          %v588 = vlaneseq
          %v589 = vshrl.u32 %v588, 7
          %v590 = vsub.s32 0, %v589
          %v591 = vrot.slane %v518, %v590
          %v597 = vunpack.c.l.b16 %v514
          %v598 = vunpack.c.l.b16 %v515
          %v599 = vunpack.c.l.b16 %v516
          %v600 = vunpack.c.l.b16 %v517
          %v601 = vpack.c.b16 %v598, %v597
          %v602 = vpack.c.b16 %v600, %v599
          %v606 = vsel %vm557, %v586, 0
          %608 = vmatprep.subr.bf16.mxu0 0
          %609 = vmatpush1.bf16.msra.mxu0 %v601
          %610 = vmatprep.subr.bf16.mxu0 0
          %611 = vmatpush1.bf16.msra.mxu0 %v602
          %612 = vmatprep.subr.bf16.mxu0 0
          %613 = vmatpush1.bf16.msra.mxu0 0
          %614 = vmatprep.subr.bf16.mxu0 0
          %615 = vmatpush1.bf16.msra.mxu0 0
          %616 = vmatprep.subr.bf16.mxu0 0
          %617 = vmatpush1.bf16.msra.mxu0 0
          %618 = vmatprep.subr.bf16.mxu0 0
          %619 = vmatpush1.bf16.msra.mxu0 0
          %620 = vmatprep.subr.bf16.mxu0 0
          %621 = vmatpush1.bf16.msra.mxu0 0
          %622 = vmatprep.subr.bf16.mxu0 0
          %623 = vmatpush1.bf16.msra.mxu0 0
          %624 = vmatprep.subr.bf16.mxu0 0
          %625 = vmatpush1.bf16.msra.mxu0 0
          %626 = vmatprep.subr.bf16.mxu0 0
          %627 = vmatpush1.bf16.msra.mxu0 0
          %628 = vmatprep.subr.bf16.mxu0 0
          %629 = vmatpush1.bf16.msra.mxu0 0
          %630 = vmatprep.subr.bf16.mxu0 0
          %631 = vmatpush1.bf16.msra.mxu0 0
          %632 = vmatprep.subr.bf16.mxu0 0
          %633 = vmatpush1.bf16.msra.mxu0 0
          %634 = vmatprep.subr.bf16.mxu0 0
          %635 = vmatpush1.bf16.msra.mxu0 0
          %636 = vmatprep.subr.bf16.mxu0 0
          %637 = vmatpush1.bf16.msra.mxu0 0
          %638 = vmatprep.subr.bf16.mxu0 0
          %639 = vmatpush1.bf16.msra.mxu0 0
          %640 = vmatprep.mubr.bf16.mxu0 0
          %641 = vmatmul.mubr.bf16.gmra.mrb[0].mxu0 %v606
          %v642 = vpop.f32.mrb[0].mxu0
          %v643 = vadd.f32 %v591, %v642
          %v644 = vpop.f32.mrb[0].mxu0
          %v645 = vpop.f32.mrb[0].mxu0
          %v646 = vpop.f32.mrb[0].mxu0
          %647 = vdwg.mxu0
          %649 = vrot.lane.b32.xlu0 %v643, 120
          %v650 = vpop.permute.xlu0 %649
          %652 = vrot.lane.b32.xlu0 %v643, 112
          %v653 = vpop.permute.xlu0 %652
          %655 = vrot.lane.b32.xlu0 %v643, 104
          %v656 = vpop.permute.xlu0 %655
          %v658 = vcombine.low %v643, %v653
          %v659 = vcombine.high %v643, %v653
          %v661 = vunpack.c.l.s4 1983009808
          %v662 = vunpack.c.0.s8 %v661
          %v663 = vlaneseq
          %v664 = vshrl.u32 %v663, 7
          %v665 = vsub.s32 %v662, %v664
          %v666 = vrot.slane %v658, %v665
          %v668 = vunpack.c.l.s4 1983009808
          %v669 = vunpack.c.0.s8 %v668
          %v670 = vlaneseq
          %v671 = vshrl.u32 %v670, 7
          %v672 = vsub.s32 %v669, %v671
          %v673 = vrot.slane %v659, %v672
          %v674 = vcombine.low %v650, %v656
          %v675 = vcombine.high %v650, %v656
          %v677 = vunpack.c.l.s4 1983009808
          %v678 = vunpack.c.0.s8 %v677
          %v679 = vlaneseq
          %v680 = vshrl.u32 %v679, 7
          %v681 = vsub.s32 %v678, %v680
          %v682 = vrot.slane %v674, %v681
          %v684 = vunpack.c.l.s4 1983009808
          %v685 = vunpack.c.0.s8 %v684
          %v686 = vlaneseq
          %v687 = vshrl.u32 %v686, 7
          %v688 = vsub.s32 %v685, %v687
          %v689 = vrot.slane %v675, %v688
          %v690 = vcombine.low %v666, %v682
          %v691 = vcombine.high %v666, %v682
          %v693 = vunpack.c.l.s4 1934713408
          %v694 = vunpack.c.0.s8 %v693
          %v695 = vlaneseq
          %v696 = vshrl.u32 %v695, 7
          %v697 = vsub.s32 %v694, %v696
          %v698 = vrot.slane %v690, %v697
          %v700 = vunpack.c.l.s4 1934713408
          %v701 = vunpack.c.0.s8 %v700
          %v702 = vlaneseq
          %v703 = vshrl.u32 %v702, 7
          %v704 = vsub.s32 %v701, %v703
          %v705 = vrot.slane %v691, %v704
          %v706 = vcombine.low %v673, %v689
          %v707 = vcombine.high %v673, %v689
          %v709 = vunpack.c.l.s4 1934713408
          %v710 = vunpack.c.0.s8 %v709
          %v711 = vlaneseq
          %v712 = vshrl.u32 %v711, 7
          %v713 = vsub.s32 %v710, %v712
          %v714 = vrot.slane %v706, %v713
          %v716 = vunpack.c.l.s4 1934713408
          %v717 = vunpack.c.0.s8 %v716
          %v718 = vlaneseq
          %v719 = vshrl.u32 %v718, 7
          %v720 = vsub.s32 %v717, %v719
          %v721 = vrot.slane %v707, %v720
          %v722 = vcombine.high %v698, 0.0
          %v723 = vcombine.high %v705, 0.0
          %v724 = vcombine.high %v714, 0.0
          %v725 = vcombine.high %v721, 0.0
          %v726 = vcombine.low %v698, %v705
          %v728 = vunpack.c.l.s4 1983009808
          %v729 = vunpack.c.0.s8 %v728
          %v730 = vlaneseq
          %v731 = vshrl.u32 %v730, 7
          %v732 = vsub.s32 %v729, %v731
          %v733 = vrot.slane %v726, %v732
          %v734 = vcombine.low %v722, %v723
          %v736 = vunpack.c.l.s4 1983009808
          %v737 = vunpack.c.0.s8 %v736
          %v738 = vlaneseq
          %v739 = vshrl.u32 %v738, 7
          %v740 = vsub.s32 %v737, %v739
          %v741 = vrot.slane %v734, %v740
          %v742 = vcombine.low %v714, %v721
          %v744 = vunpack.c.l.s4 1983009808
          %v745 = vunpack.c.0.s8 %v744
          %v746 = vlaneseq
          %v747 = vshrl.u32 %v746, 7
          %v748 = vsub.s32 %v745, %v747
          %v749 = vrot.slane %v742, %v748
          %v750 = vcombine.low %v724, %v725
          %v752 = vunpack.c.l.s4 1983009808
          %v753 = vunpack.c.0.s8 %v752
          %v754 = vlaneseq
          %v755 = vshrl.u32 %v754, 7
          %v756 = vsub.s32 %v753, %v755
          %v757 = vrot.slane %v750, %v756
          %v758 = vcombine.low %v733, %v741
          %v759 = vcombine.high %v733, %v741
          %v761 = vunpack.c.l.s4 1934713408
          %v762 = vunpack.c.0.s8 %v761
          %v763 = vlaneseq
          %v764 = vshrl.u32 %v763, 7
          %v765 = vsub.s32 %v762, %v764
          %v766 = vrot.slane %v758, %v765
          %v768 = vunpack.c.l.s4 1934713408
          %v769 = vunpack.c.0.s8 %v768
          %v770 = vlaneseq
          %v771 = vshrl.u32 %v770, 7
          %v772 = vsub.s32 %v769, %v771
          %v773 = vrot.slane %v759, %v772
          %v774 = vcombine.low %v749, %v757
          %v775 = vcombine.high %v749, %v757
          %v777 = vunpack.c.l.s4 1934713408
          %v778 = vunpack.c.0.s8 %v777
          %v779 = vlaneseq
          %v780 = vshrl.u32 %v779, 7
          %v781 = vsub.s32 %v778, %v780
          %v782 = vrot.slane %v774, %v781
          %v784 = vunpack.c.l.s4 1934713408
          %v785 = vunpack.c.0.s8 %v784
          %v786 = vlaneseq
          %v787 = vshrl.u32 %v786, 7
          %v788 = vsub.s32 %v785, %v787
          %v789 = vrot.slane %v775, %v788
          %v790 = vcombine.low %v766, %v782
          %v791 = vcombine.high %v766, %v782
          %v792 = vcombine.low %v773, %v789
          %v793 = vcombine.high %v773, %v789
          %794 = vrot.lane.b32.xlu0 %v643, 96
          %v795 = vpop.permute.xlu0 %794
          %796 = vrot.lane.b32.xlu0 %v650, 96
          %v797 = vpop.permute.xlu0 %796
          %798 = vrot.lane.b32.xlu0 %v653, 96
          %v799 = vpop.permute.xlu0 %798
          %800 = vrot.lane.b32.xlu0 %v656, 96
          %v801 = vpop.permute.xlu0 %800
          %v806 = vcombine.low %v795, %v799
          %v807 = vcombine.high %v795, %v799
          %v809 = vunpack.c.l.s4 1983009808
          %v810 = vunpack.c.0.s8 %v809
          %v811 = vlaneseq
          %v812 = vshrl.u32 %v811, 7
          %v813 = vsub.s32 %v810, %v812
          %v814 = vrot.slane %v806, %v813
          %v816 = vunpack.c.l.s4 1983009808
          %v817 = vunpack.c.0.s8 %v816
          %v818 = vlaneseq
          %v819 = vshrl.u32 %v818, 7
          %v820 = vsub.s32 %v817, %v819
          %v821 = vrot.slane %v807, %v820
          %v822 = vcombine.low %v797, %v801
          %v823 = vcombine.high %v797, %v801
          %v825 = vunpack.c.l.s4 1983009808
          %v826 = vunpack.c.0.s8 %v825
          %v827 = vlaneseq
          %v828 = vshrl.u32 %v827, 7
          %v829 = vsub.s32 %v826, %v828
          %v830 = vrot.slane %v822, %v829
          %v832 = vunpack.c.l.s4 1983009808
          %v833 = vunpack.c.0.s8 %v832
          %v834 = vlaneseq
          %v835 = vshrl.u32 %v834, 7
          %v836 = vsub.s32 %v833, %v835
          %v837 = vrot.slane %v823, %v836
          %v838 = vcombine.low %v814, %v830
          %v839 = vcombine.high %v814, %v830
          %v841 = vunpack.c.l.s4 1934713408
          %v842 = vunpack.c.0.s8 %v841
          %v843 = vlaneseq
          %v844 = vshrl.u32 %v843, 7
          %v845 = vsub.s32 %v842, %v844
          %v846 = vrot.slane %v838, %v845
          %v848 = vunpack.c.l.s4 1934713408
          %v849 = vunpack.c.0.s8 %v848
          %v850 = vlaneseq
          %v851 = vshrl.u32 %v850, 7
          %v852 = vsub.s32 %v849, %v851
          %v853 = vrot.slane %v839, %v852
          %v854 = vcombine.low %v821, %v837
          %v855 = vcombine.high %v821, %v837
          %v857 = vunpack.c.l.s4 1934713408
          %v858 = vunpack.c.0.s8 %v857
          %v859 = vlaneseq
          %v860 = vshrl.u32 %v859, 7
          %v861 = vsub.s32 %v858, %v860
          %v862 = vrot.slane %v854, %v861
          %v864 = vunpack.c.l.s4 1934713408
          %v865 = vunpack.c.0.s8 %v864
          %v866 = vlaneseq
          %v867 = vshrl.u32 %v866, 7
          %v868 = vsub.s32 %v865, %v867
          %v869 = vrot.slane %v855, %v868
          %v870 = vcombine.high %v846, 0.0
          %v871 = vcombine.high %v853, 0.0
          %v872 = vcombine.high %v862, 0.0
          %v873 = vcombine.high %v869, 0.0
          %v874 = vcombine.low %v846, %v853
          %v876 = vunpack.c.l.s4 1983009808
          %v877 = vunpack.c.0.s8 %v876
          %v878 = vlaneseq
          %v879 = vshrl.u32 %v878, 7
          %v880 = vsub.s32 %v877, %v879
          %v881 = vrot.slane %v874, %v880
          %v882 = vcombine.low %v870, %v871
          %v884 = vunpack.c.l.s4 1983009808
          %v885 = vunpack.c.0.s8 %v884
          %v886 = vlaneseq
          %v887 = vshrl.u32 %v886, 7
          %v888 = vsub.s32 %v885, %v887
          %v889 = vrot.slane %v882, %v888
          %v890 = vcombine.low %v862, %v869
          %v892 = vunpack.c.l.s4 1983009808
          %v893 = vunpack.c.0.s8 %v892
          %v894 = vlaneseq
          %v895 = vshrl.u32 %v894, 7
          %v896 = vsub.s32 %v893, %v895
          %v897 = vrot.slane %v890, %v896
          %v898 = vcombine.low %v872, %v873
          %v900 = vunpack.c.l.s4 1983009808
          %v901 = vunpack.c.0.s8 %v900
          %v902 = vlaneseq
          %v903 = vshrl.u32 %v902, 7
          %v904 = vsub.s32 %v901, %v903
          %v905 = vrot.slane %v898, %v904
          %v906 = vcombine.low %v881, %v889
          %v907 = vcombine.high %v881, %v889
          %v909 = vunpack.c.l.s4 1934713408
          %v910 = vunpack.c.0.s8 %v909
          %v911 = vlaneseq
          %v912 = vshrl.u32 %v911, 7
          %v913 = vsub.s32 %v910, %v912
          %v914 = vrot.slane %v906, %v913
          %v916 = vunpack.c.l.s4 1934713408
          %v917 = vunpack.c.0.s8 %v916
          %v918 = vlaneseq
          %v919 = vshrl.u32 %v918, 7
          %v920 = vsub.s32 %v917, %v919
          %v921 = vrot.slane %v907, %v920
          %v922 = vcombine.low %v897, %v905
          %v923 = vcombine.high %v897, %v905
          %v925 = vunpack.c.l.s4 1934713408
          %v926 = vunpack.c.0.s8 %v925
          %v927 = vlaneseq
          %v928 = vshrl.u32 %v927, 7
          %v929 = vsub.s32 %v926, %v928
          %v930 = vrot.slane %v922, %v929
          %v932 = vunpack.c.l.s4 1934713408
          %v933 = vunpack.c.0.s8 %v932
          %v934 = vlaneseq
          %v935 = vshrl.u32 %v934, 7
          %v936 = vsub.s32 %v933, %v935
          %v937 = vrot.slane %v923, %v936
          %v938 = vcombine.low %v914, %v930
          %v939 = vcombine.high %v914, %v930
          %v940 = vcombine.low %v921, %v937
          %v941 = vcombine.high %v921, %v937
          %942 = vrot.lane.b32.xlu0 %v643, 64
          %v943 = vpop.permute.xlu0 %942
          %944 = vrot.lane.b32.xlu0 %v650, 64
          %v945 = vpop.permute.xlu0 %944
          %946 = vrot.lane.b32.xlu0 %v653, 64
          %v947 = vpop.permute.xlu0 %946
          %948 = vrot.lane.b32.xlu0 %v656, 64
          %v949 = vpop.permute.xlu0 %948
          %v954 = vcombine.low %v943, %v947
          %v955 = vcombine.high %v943, %v947
          %v957 = vunpack.c.l.s4 1983009808
          %v958 = vunpack.c.0.s8 %v957
          %v959 = vlaneseq
          %v960 = vshrl.u32 %v959, 7
          %v961 = vsub.s32 %v958, %v960
          %v962 = vrot.slane %v954, %v961
          %v964 = vunpack.c.l.s4 1983009808
          %v965 = vunpack.c.0.s8 %v964
          %v966 = vlaneseq
          %v967 = vshrl.u32 %v966, 7
          %v968 = vsub.s32 %v965, %v967
          %v969 = vrot.slane %v955, %v968
          %v970 = vcombine.low %v945, %v949
          %v971 = vcombine.high %v945, %v949
          %v973 = vunpack.c.l.s4 1983009808
          %v974 = vunpack.c.0.s8 %v973
          %v975 = vlaneseq
          %v976 = vshrl.u32 %v975, 7
          %v977 = vsub.s32 %v974, %v976
          %v978 = vrot.slane %v970, %v977
          %v980 = vunpack.c.l.s4 1983009808
          %v981 = vunpack.c.0.s8 %v980
          %v982 = vlaneseq
          %v983 = vshrl.u32 %v982, 7
          %v984 = vsub.s32 %v981, %v983
          %v985 = vrot.slane %v971, %v984
          %v986 = vcombine.low %v962, %v978
          %v987 = vcombine.high %v962, %v978
          %v989 = vunpack.c.l.s4 1934713408
          %v990 = vunpack.c.0.s8 %v989
          %v991 = vlaneseq
          %v992 = vshrl.u32 %v991, 7
          %v993 = vsub.s32 %v990, %v992
          %v994 = vrot.slane %v986, %v993
          %v996 = vunpack.c.l.s4 1934713408
          %v997 = vunpack.c.0.s8 %v996
          %v998 = vlaneseq
          %v999 = vshrl.u32 %v998, 7
          %v1000 = vsub.s32 %v997, %v999
          %v1001 = vrot.slane %v987, %v1000
          %v1002 = vcombine.low %v969, %v985
          %v1003 = vcombine.high %v969, %v985
          %v1005 = vunpack.c.l.s4 1934713408
          %v1006 = vunpack.c.0.s8 %v1005
          %v1007 = vlaneseq
          %v1008 = vshrl.u32 %v1007, 7
          %v1009 = vsub.s32 %v1006, %v1008
          %v1010 = vrot.slane %v1002, %v1009
          %v1012 = vunpack.c.l.s4 1934713408
          %v1013 = vunpack.c.0.s8 %v1012
          %v1014 = vlaneseq
          %v1015 = vshrl.u32 %v1014, 7
          %v1016 = vsub.s32 %v1013, %v1015
          %v1017 = vrot.slane %v1003, %v1016
          %v1018 = vcombine.high %v994, 0.0
          %v1019 = vcombine.high %v1001, 0.0
          %v1020 = vcombine.high %v1010, 0.0
          %v1021 = vcombine.high %v1017, 0.0
          %v1022 = vcombine.low %v994, %v1001
          %v1024 = vunpack.c.l.s4 1983009808
          %v1025 = vunpack.c.0.s8 %v1024
          %v1026 = vlaneseq
          %v1027 = vshrl.u32 %v1026, 7
          %v1028 = vsub.s32 %v1025, %v1027
          %v1029 = vrot.slane %v1022, %v1028
          %v1030 = vcombine.low %v1018, %v1019
          %v1032 = vunpack.c.l.s4 1983009808
          %v1033 = vunpack.c.0.s8 %v1032
          %v1034 = vlaneseq
          %v1035 = vshrl.u32 %v1034, 7
          %v1036 = vsub.s32 %v1033, %v1035
          %v1037 = vrot.slane %v1030, %v1036
          %v1038 = vcombine.low %v1010, %v1017
          %v1040 = vunpack.c.l.s4 1983009808
          %v1041 = vunpack.c.0.s8 %v1040
          %v1042 = vlaneseq
          %v1043 = vshrl.u32 %v1042, 7
          %v1044 = vsub.s32 %v1041, %v1043
          %v1045 = vrot.slane %v1038, %v1044
          %v1046 = vcombine.low %v1020, %v1021
          %v1048 = vunpack.c.l.s4 1983009808
          %v1049 = vunpack.c.0.s8 %v1048
          %v1050 = vlaneseq
          %v1051 = vshrl.u32 %v1050, 7
          %v1052 = vsub.s32 %v1049, %v1051
          %v1053 = vrot.slane %v1046, %v1052
          %v1054 = vcombine.low %v1029, %v1037
          %v1055 = vcombine.high %v1029, %v1037
          %v1057 = vunpack.c.l.s4 1934713408
          %v1058 = vunpack.c.0.s8 %v1057
          %v1059 = vlaneseq
          %v1060 = vshrl.u32 %v1059, 7
          %v1061 = vsub.s32 %v1058, %v1060
          %v1062 = vrot.slane %v1054, %v1061
          %v1064 = vunpack.c.l.s4 1934713408
          %v1065 = vunpack.c.0.s8 %v1064
          %v1066 = vlaneseq
          %v1067 = vshrl.u32 %v1066, 7
          %v1068 = vsub.s32 %v1065, %v1067
          %v1069 = vrot.slane %v1055, %v1068
          %v1070 = vcombine.low %v1045, %v1053
          %v1071 = vcombine.high %v1045, %v1053
          %v1073 = vunpack.c.l.s4 1934713408
          %v1074 = vunpack.c.0.s8 %v1073
          %v1075 = vlaneseq
          %v1076 = vshrl.u32 %v1075, 7
          %v1077 = vsub.s32 %v1074, %v1076
          %v1078 = vrot.slane %v1070, %v1077
          %v1080 = vunpack.c.l.s4 1934713408
          %v1081 = vunpack.c.0.s8 %v1080
          %v1082 = vlaneseq
          %v1083 = vshrl.u32 %v1082, 7
          %v1084 = vsub.s32 %v1081, %v1083
          %v1085 = vrot.slane %v1071, %v1084
          %v1086 = vcombine.low %v1062, %v1078
          %v1087 = vcombine.high %v1062, %v1078
          %v1088 = vcombine.low %v1069, %v1085
          %v1089 = vcombine.high %v1069, %v1085
          %v1090 = vpack.c.bf16 %v790, %v790
          %v1091 = vpack.c.bf16 %v791, %v791
          %v1092 = vpack.c.bf16 %v792, %v792
          %v1093 = vpack.c.bf16 %v793, %v793
          %v1094 = vpack.c.bf16 %v938, %v938
          %v1095 = vpack.c.bf16 %v939, %v939
          %v1096 = vpack.c.bf16 %v940, %v940
          %v1097 = vpack.c.bf16 %v941, %v941
          %v1098 = vpack.c.bf16 %v1086, %v1086
          %v1099 = vpack.c.bf16 %v1087, %v1087
          %v1100 = vpack.c.bf16 %v1088, %v1088
          %v1101 = vpack.c.bf16 %v1089, %v1089
          %vm1102 = vcmask 64512
          %v1104 = vsel %vm1102, %v1090, 0
          %v1107 = vsel %vm1102, %v1094, 0
          %1109 = vmatprep.subr.bf16.mxu0 0
          %1110 = vmatpush1.bf16.xpose.msra.mxu0 %v1107
          %1111 = vmatprep.subr.bf16.mxu0 0
          %1112 = vmatpush1.bf16.xpose.msra.mxu0 0
          %1113 = vmatprep.subr.bf16.mxu0 0
          %1114 = vmatpush1.bf16.xpose.msra.mxu0 0
          %1115 = vmatprep.subr.bf16.mxu0 0
          %1116 = vmatpush1.bf16.xpose.msra.mxu0 0
          %1117 = vmatprep.subr.bf16.mxu0 0
          %1118 = vmatpush1.bf16.xpose.msra.mxu0 0
          %1119 = vmatprep.subr.bf16.mxu0 0
          %1120 = vmatpush1.bf16.xpose.msra.mxu0 0
          %1121 = vmatprep.subr.bf16.mxu0 0
          %1122 = vmatpush1.bf16.xpose.msra.mxu0 0
          %1123 = vmatprep.subr.bf16.mxu0 0
          %1124 = vmatpush1.bf16.xpose.msra.mxu0 0
          %1125 = vmatprep.subr.bf16.mxu0 0
          %1126 = vmatpush1.bf16.xpose.msra.mxu0 0
          %1127 = vmatprep.subr.bf16.mxu0 0
          %1128 = vmatpush1.bf16.xpose.msra.mxu0 0
          %1129 = vmatprep.subr.bf16.mxu0 0
          %1130 = vmatpush1.bf16.xpose.msra.mxu0 0
          %1131 = vmatprep.subr.bf16.mxu0 0
          %1132 = vmatpush1.bf16.xpose.msra.mxu0 0
          %1133 = vmatprep.subr.bf16.mxu0 0
          %1134 = vmatpush1.bf16.xpose.msra.mxu0 0
          %1135 = vmatprep.subr.bf16.mxu0 0
          %1136 = vmatpush1.bf16.xpose.msra.mxu0 0
          %1137 = vmatprep.subr.bf16.mxu0 0
          %1138 = vmatpush1.bf16.xpose.msra.mxu0 0
          %1139 = vmatprep.subr.bf16.mxu0 0
          %1140 = vmatpush1.bf16.xpose.msra.mxu0 0
          %1141 = vmatprep.mubr.bf16.mxu0 0
          %1142 = vmatmul.mubr.bf16.gmra.mrb[0].mxu0 %v1104
          %v1143 = vpop.f32.mrb[0].mxu0
          %v1144 = vadd.f32 0.0, %v1143
          %v1145 = vpop.f32.mrb[0].mxu0
          %v1146 = vpop.f32.mrb[0].mxu0
          %v1147 = vpop.f32.mrb[0].mxu0
          %1148 = vdwg.mxu0
          %v1150 = vsel %vm1102, %v1091, 0
          %v1153 = vsel %vm1102, %v1095, 0
          %1155 = vmatprep.subr.bf16.mxu0 0
          %1156 = vmatpush1.bf16.xpose.msra.mxu0 %v1153
          %1157 = vmatprep.subr.bf16.mxu0 0
          %1158 = vmatpush1.bf16.xpose.msra.mxu0 0
          %1159 = vmatprep.subr.bf16.mxu0 0
          %1160 = vmatpush1.bf16.xpose.msra.mxu0 0
          %1161 = vmatprep.subr.bf16.mxu0 0
          %1162 = vmatpush1.bf16.xpose.msra.mxu0 0
          %1163 = vmatprep.subr.bf16.mxu0 0
          %1164 = vmatpush1.bf16.xpose.msra.mxu0 0
          %1165 = vmatprep.subr.bf16.mxu0 0
          %1166 = vmatpush1.bf16.xpose.msra.mxu0 0
          %1167 = vmatprep.subr.bf16.mxu0 0
          %1168 = vmatpush1.bf16.xpose.msra.mxu0 0
          %1169 = vmatprep.subr.bf16.mxu0 0
          %1170 = vmatpush1.bf16.xpose.msra.mxu0 0
          %1171 = vmatprep.subr.bf16.mxu0 0
          %1172 = vmatpush1.bf16.xpose.msra.mxu0 0
          %1173 = vmatprep.subr.bf16.mxu0 0
          %1174 = vmatpush1.bf16.xpose.msra.mxu0 0
          %1175 = vmatprep.subr.bf16.mxu0 0
          %1176 = vmatpush1.bf16.xpose.msra.mxu0 0
          %1177 = vmatprep.subr.bf16.mxu0 0
          %1178 = vmatpush1.bf16.xpose.msra.mxu0 0
          %1179 = vmatprep.subr.bf16.mxu0 0
          %1180 = vmatpush1.bf16.xpose.msra.mxu0 0
          %1181 = vmatprep.subr.bf16.mxu0 0
          %1182 = vmatpush1.bf16.xpose.msra.mxu0 0
          %1183 = vmatprep.subr.bf16.mxu0 0
          %1184 = vmatpush1.bf16.xpose.msra.mxu0 0
          %1185 = vmatprep.subr.bf16.mxu0 0
          %1186 = vmatpush1.bf16.xpose.msra.mxu0 0
          %1187 = vmatprep.mubr.bf16.mxu0 0
          %1188 = vmatmul.mubr.bf16.gmra.mrb[0].mxu0 %v1150
          %v1189 = vpop.f32.mrb[0].mxu0
          %v1190 = vadd.f32 0.0, %v1189
          %v1191 = vpop.f32.mrb[0].mxu0
          %v1192 = vpop.f32.mrb[0].mxu0
          %v1193 = vpop.f32.mrb[0].mxu0
          %1194 = vdwg.mxu0
          %v1196 = vsel %vm1102, %v1092, 0
          %v1199 = vsel %vm1102, %v1096, 0
          %1201 = vmatprep.subr.bf16.mxu0 0
          %1202 = vmatpush1.bf16.xpose.msra.mxu0 %v1199
          %1203 = vmatprep.subr.bf16.mxu0 0
          %1204 = vmatpush1.bf16.xpose.msra.mxu0 0
          %1205 = vmatprep.subr.bf16.mxu0 0
          %1206 = vmatpush1.bf16.xpose.msra.mxu0 0
          %1207 = vmatprep.subr.bf16.mxu0 0
          %1208 = vmatpush1.bf16.xpose.msra.mxu0 0
          %1209 = vmatprep.subr.bf16.mxu0 0
          %1210 = vmatpush1.bf16.xpose.msra.mxu0 0
          %1211 = vmatprep.subr.bf16.mxu0 0
          %1212 = vmatpush1.bf16.xpose.msra.mxu0 0
          %1213 = vmatprep.subr.bf16.mxu0 0
          %1214 = vmatpush1.bf16.xpose.msra.mxu0 0
          %1215 = vmatprep.subr.bf16.mxu0 0
          %1216 = vmatpush1.bf16.xpose.msra.mxu0 0
          %1217 = vmatprep.subr.bf16.mxu0 0
          %1218 = vmatpush1.bf16.xpose.msra.mxu0 0
          %1219 = vmatprep.subr.bf16.mxu0 0
          %1220 = vmatpush1.bf16.xpose.msra.mxu0 0
          %1221 = vmatprep.subr.bf16.mxu0 0
          %1222 = vmatpush1.bf16.xpose.msra.mxu0 0
          %1223 = vmatprep.subr.bf16.mxu0 0
          %1224 = vmatpush1.bf16.xpose.msra.mxu0 0
          %1225 = vmatprep.subr.bf16.mxu0 0
          %1226 = vmatpush1.bf16.xpose.msra.mxu0 0
          %1227 = vmatprep.subr.bf16.mxu0 0
          %1228 = vmatpush1.bf16.xpose.msra.mxu0 0
          %1229 = vmatprep.subr.bf16.mxu0 0
          %1230 = vmatpush1.bf16.xpose.msra.mxu0 0
          %1231 = vmatprep.subr.bf16.mxu0 0
          %1232 = vmatpush1.bf16.xpose.msra.mxu0 0
          %1233 = vmatprep.mubr.bf16.mxu0 0
          %1234 = vmatmul.mubr.bf16.gmra.mrb[0].mxu0 %v1196
          %v1235 = vpop.f32.mrb[0].mxu0
          %v1236 = vadd.f32 0.0, %v1235
          %v1237 = vpop.f32.mrb[0].mxu0
          %v1238 = vpop.f32.mrb[0].mxu0
          %v1239 = vpop.f32.mrb[0].mxu0
          %1240 = vdwg.mxu0
          %v1242 = vsel %vm1102, %v1093, 0
          %v1245 = vsel %vm1102, %v1097, 0
          %1247 = vmatprep.subr.bf16.mxu0 0
          %1248 = vmatpush1.bf16.xpose.msra.mxu0 %v1245
          %1249 = vmatprep.subr.bf16.mxu0 0
          %1250 = vmatpush1.bf16.xpose.msra.mxu0 0
          %1251 = vmatprep.subr.bf16.mxu0 0
          %1252 = vmatpush1.bf16.xpose.msra.mxu0 0
          %1253 = vmatprep.subr.bf16.mxu0 0
          %1254 = vmatpush1.bf16.xpose.msra.mxu0 0
          %1255 = vmatprep.subr.bf16.mxu0 0
          %1256 = vmatpush1.bf16.xpose.msra.mxu0 0
          %1257 = vmatprep.subr.bf16.mxu0 0
          %1258 = vmatpush1.bf16.xpose.msra.mxu0 0
          %1259 = vmatprep.subr.bf16.mxu0 0
          %1260 = vmatpush1.bf16.xpose.msra.mxu0 0
          %1261 = vmatprep.subr.bf16.mxu0 0
          %1262 = vmatpush1.bf16.xpose.msra.mxu0 0
          %1263 = vmatprep.subr.bf16.mxu0 0
          %1264 = vmatpush1.bf16.xpose.msra.mxu0 0
          %1265 = vmatprep.subr.bf16.mxu0 0
          %1266 = vmatpush1.bf16.xpose.msra.mxu0 0
          %1267 = vmatprep.subr.bf16.mxu0 0
          %1268 = vmatpush1.bf16.xpose.msra.mxu0 0
          %1269 = vmatprep.subr.bf16.mxu0 0
          %1270 = vmatpush1.bf16.xpose.msra.mxu0 0
          %1271 = vmatprep.subr.bf16.mxu0 0
          %1272 = vmatpush1.bf16.xpose.msra.mxu0 0
          %1273 = vmatprep.subr.bf16.mxu0 0
          %1274 = vmatpush1.bf16.xpose.msra.mxu0 0
          %1275 = vmatprep.subr.bf16.mxu0 0
          %1276 = vmatpush1.bf16.xpose.msra.mxu0 0
          %1277 = vmatprep.subr.bf16.mxu0 0
          %1278 = vmatpush1.bf16.xpose.msra.mxu0 0
          %1279 = vmatprep.mubr.bf16.mxu0 0
          %1280 = vmatmul.mubr.bf16.gmra.mrb[0].mxu0 %v1242
          %v1281 = vpop.f32.mrb[0].mxu0
          %v1282 = vadd.f32 0.0, %v1281
          %v1283 = vpop.f32.mrb[0].mxu0
          %v1284 = vpop.f32.mrb[0].mxu0
          %v1285 = vpop.f32.mrb[0].mxu0
          %1286 = vdwg.mxu0
          %v1287 = vmul.f32 %v1144, 0.35355338
          %v1288 = vmul.f32 %v1190, 0.35355338
          %v1289 = vmul.f32 %v1236, 0.35355338
          %v1290 = vmul.f32 %v1282, 0.35355338
          %v1291 = vlaneseq
          %v1292 = vand.u32 %v1291, 127
          %vm1293 = vcmp.ge.s32.totalorder %v549, %v1292
          %v1294 = vsel %vm1293, 1, 0
          %vm1295 = vcmp.eq.s32.totalorder %v1294, 1
          %v1296 = vsel %vm1295, %v1287, -10000.0
          %v1297 = vsel %vm1295, %v1288, -10000.0
          %v1298 = vsel %vm1295, %v1289, -10000.0
          %v1299 = vsel %vm1295, %v1290, -10000.0
          %v1300 = vsel %vm1102, %v1296, -inf
          %1301 = vmax.xlane.f32.xlu0 %v1300
          %v1302 = vpop.xlane.xlu0 %1301
          %v1303 = vsel %vm1102, %v1297, -inf
          %1304 = vmax.xlane.f32.xlu0 %v1303
          %v1305 = vpop.xlane.xlu0 %1304
          %v1306 = vsel %vm1102, %v1298, -inf
          %1307 = vmax.xlane.f32.xlu0 %v1306
          %v1308 = vpop.xlane.xlu0 %1307
          %v1309 = vsel %vm1102, %v1299, -inf
          %1310 = vmax.xlane.f32.xlu0 %v1309
          %v1311 = vpop.xlane.xlu0 %1310
          %v1312 = vmax.f32 %v1302, -1e+30
          %v1313 = vmax.f32 %v1305, -1e+30
          %v1314 = vmax.f32 %v1308, -1e+30
          %v1315 = vmax.f32 %v1311, -1e+30
          %v1316 = vsub.f32 -1e+30, %v1312
          %v1317 = vsub.f32 -1e+30, %v1313
          %v1318 = vsub.f32 -1e+30, %v1314
          %v1319 = vsub.f32 -1e+30, %v1315
          %v1320 = vmul.f32 %v1316, 1.442695
          %v1321 = vpow.pop %v1320
          %v1322 = vmul.f32 %v1317, 1.442695
          %v1323 = vpow.pop %v1322
          %v1324 = vmul.f32 %v1318, 1.442695
          %v1325 = vpow.pop %v1324
          %v1326 = vmul.f32 %v1319, 1.442695
          %v1327 = vpow.pop %v1326
          %v1328 = vsub.f32 %v1296, %v1312
          %v1329 = vsub.f32 %v1297, %v1313
          %v1330 = vsub.f32 %v1298, %v1314
          %v1331 = vsub.f32 %v1299, %v1315
          %v1332 = vmul.f32 %v1328, 1.442695
          %v1333 = vpow.pop %v1332
          %v1334 = vmul.f32 %v1329, 1.442695
          %v1335 = vpow.pop %v1334
          %v1336 = vmul.f32 %v1330, 1.442695
          %v1337 = vpow.pop %v1336
          %v1338 = vmul.f32 %v1331, 1.442695
          %v1339 = vpow.pop %v1338
          %v1340 = vmul.f32 %v1321, 0.0
          %v1341 = vmul.f32 %v1323, 0.0
          %v1342 = vmul.f32 %v1325, 0.0
          %v1343 = vmul.f32 %v1327, 0.0
          %v1344 = vsel %vm1102, %v1333, 0.0
          %1345 = vadd.xlane.f32.xlu0 %v1344
          %v1346 = vpop.xlane.xlu0 %1345
          %v1347 = vsel %vm1102, %v1335, 0.0
          %1348 = vadd.xlane.f32.xlu0 %v1347
          %v1349 = vpop.xlane.xlu0 %1348
          %v1350 = vsel %vm1102, %v1337, 0.0
          %1351 = vadd.xlane.f32.xlu0 %v1350
          %v1352 = vpop.xlane.xlu0 %1351
          %v1353 = vsel %vm1102, %v1339, 0.0
          %1354 = vadd.xlane.f32.xlu0 %v1353
          %v1355 = vpop.xlane.xlu0 %1354
          %v1356 = vadd.f32 %v1340, %v1346
          %v1357 = vadd.f32 %v1341, %v1349
          %v1358 = vadd.f32 %v1342, %v1352
          %v1359 = vadd.f32 %v1343, %v1355
          %v1360 = vpack.c.bf16 %v1333, %v1333
          %v1361 = vpack.c.bf16 %v1335, %v1335
          %v1362 = vpack.c.bf16 %v1337, %v1337
          %v1363 = vpack.c.bf16 %v1339, %v1339
          %v1365 = vsel %vm1102, %v1360, 0
          %vm1367 = vcmask 1043456
          %v1369 = vsel %vm1367, %v1098, 0
          %1371 = vmatprep.subr.bf16.mxu0 0
          %1372 = vmatpush1.bf16.msra.mxu0 %v1369
          %1373 = vmatprep.subr.bf16.mxu0 0
          %1374 = vmatpush1.bf16.msra.mxu0 0
          %1375 = vmatprep.subr.bf16.mxu0 0
          %1376 = vmatpush1.bf16.msra.mxu0 0
          %1377 = vmatprep.subr.bf16.mxu0 0
          %1378 = vmatpush1.bf16.msra.mxu0 0
          %1379 = vmatprep.subr.bf16.mxu0 0
          %1380 = vmatpush1.bf16.msra.mxu0 0
          %1381 = vmatprep.subr.bf16.mxu0 0
          %1382 = vmatpush1.bf16.msra.mxu0 0
          %1383 = vmatprep.subr.bf16.mxu0 0
          %1384 = vmatpush1.bf16.msra.mxu0 0
          %1385 = vmatprep.subr.bf16.mxu0 0
          %1386 = vmatpush1.bf16.msra.mxu0 0
          %1387 = vmatprep.subr.bf16.mxu0 0
          %1388 = vmatpush1.bf16.msra.mxu0 0
          %1389 = vmatprep.subr.bf16.mxu0 0
          %1390 = vmatpush1.bf16.msra.mxu0 0
          %1391 = vmatprep.subr.bf16.mxu0 0
          %1392 = vmatpush1.bf16.msra.mxu0 0
          %1393 = vmatprep.subr.bf16.mxu0 0
          %1394 = vmatpush1.bf16.msra.mxu0 0
          %1395 = vmatprep.subr.bf16.mxu0 0
          %1396 = vmatpush1.bf16.msra.mxu0 0
          %1397 = vmatprep.subr.bf16.mxu0 0
          %1398 = vmatpush1.bf16.msra.mxu0 0
          %1399 = vmatprep.subr.bf16.mxu0 0
          %1400 = vmatpush1.bf16.msra.mxu0 0
          %1401 = vmatprep.subr.bf16.mxu0 0
          %1402 = vmatpush1.bf16.msra.mxu0 0
          %1403 = vmatprep.mubr.bf16.mxu0 0
          %1404 = vmatmul.mubr.bf16.gmra.mrb[0].mxu0 %v1365
          %v1405 = vpop.f32.mrb[0].mxu0
          %v1406 = vadd.f32 0.0, %v1405
          %v1407 = vpop.f32.mrb[0].mxu0
          %v1408 = vpop.f32.mrb[0].mxu0
          %v1409 = vpop.f32.mrb[0].mxu0
          %1410 = vdwg.mxu0
          %v1412 = vsel %vm1102, %v1361, 0
          %v1415 = vsel %vm1367, %v1099, 0
          %1417 = vmatprep.subr.bf16.mxu0 0
          %1418 = vmatpush1.bf16.msra.mxu0 %v1415
          %1419 = vmatprep.subr.bf16.mxu0 0
          %1420 = vmatpush1.bf16.msra.mxu0 0
          %1421 = vmatprep.subr.bf16.mxu0 0
          %1422 = vmatpush1.bf16.msra.mxu0 0
          %1423 = vmatprep.subr.bf16.mxu0 0
          %1424 = vmatpush1.bf16.msra.mxu0 0
          %1425 = vmatprep.subr.bf16.mxu0 0
          %1426 = vmatpush1.bf16.msra.mxu0 0
          %1427 = vmatprep.subr.bf16.mxu0 0
          %1428 = vmatpush1.bf16.msra.mxu0 0
          %1429 = vmatprep.subr.bf16.mxu0 0
          %1430 = vmatpush1.bf16.msra.mxu0 0
          %1431 = vmatprep.subr.bf16.mxu0 0
          %1432 = vmatpush1.bf16.msra.mxu0 0
          %1433 = vmatprep.subr.bf16.mxu0 0
          %1434 = vmatpush1.bf16.msra.mxu0 0
          %1435 = vmatprep.subr.bf16.mxu0 0
          %1436 = vmatpush1.bf16.msra.mxu0 0
          %1437 = vmatprep.subr.bf16.mxu0 0
          %1438 = vmatpush1.bf16.msra.mxu0 0
          %1439 = vmatprep.subr.bf16.mxu0 0
          %1440 = vmatpush1.bf16.msra.mxu0 0
          %1441 = vmatprep.subr.bf16.mxu0 0
          %1442 = vmatpush1.bf16.msra.mxu0 0
          %1443 = vmatprep.subr.bf16.mxu0 0
          %1444 = vmatpush1.bf16.msra.mxu0 0
          %1445 = vmatprep.subr.bf16.mxu0 0
          %1446 = vmatpush1.bf16.msra.mxu0 0
          %1447 = vmatprep.subr.bf16.mxu0 0
          %1448 = vmatpush1.bf16.msra.mxu0 0
          %1449 = vmatprep.mubr.bf16.mxu0 0
          %1450 = vmatmul.mubr.bf16.gmra.mrb[0].mxu0 %v1412
          %v1451 = vpop.f32.mrb[0].mxu0
          %v1452 = vadd.f32 0.0, %v1451
          %v1453 = vpop.f32.mrb[0].mxu0
          %v1454 = vpop.f32.mrb[0].mxu0
          %v1455 = vpop.f32.mrb[0].mxu0
          %1456 = vdwg.mxu0
          %v1458 = vsel %vm1102, %v1362, 0
          %v1461 = vsel %vm1367, %v1100, 0
          %1463 = vmatprep.subr.bf16.mxu0 0
          %1464 = vmatpush1.bf16.msra.mxu0 %v1461
          %1465 = vmatprep.subr.bf16.mxu0 0
          %1466 = vmatpush1.bf16.msra.mxu0 0
          %1467 = vmatprep.subr.bf16.mxu0 0
          %1468 = vmatpush1.bf16.msra.mxu0 0
          %1469 = vmatprep.subr.bf16.mxu0 0
          %1470 = vmatpush1.bf16.msra.mxu0 0
          %1471 = vmatprep.subr.bf16.mxu0 0
          %1472 = vmatpush1.bf16.msra.mxu0 0
          %1473 = vmatprep.subr.bf16.mxu0 0
          %1474 = vmatpush1.bf16.msra.mxu0 0
          %1475 = vmatprep.subr.bf16.mxu0 0
          %1476 = vmatpush1.bf16.msra.mxu0 0
          %1477 = vmatprep.subr.bf16.mxu0 0
          %1478 = vmatpush1.bf16.msra.mxu0 0
          %1479 = vmatprep.subr.bf16.mxu0 0
          %1480 = vmatpush1.bf16.msra.mxu0 0
          %1481 = vmatprep.subr.bf16.mxu0 0
          %1482 = vmatpush1.bf16.msra.mxu0 0
          %1483 = vmatprep.subr.bf16.mxu0 0
          %1484 = vmatpush1.bf16.msra.mxu0 0
          %1485 = vmatprep.subr.bf16.mxu0 0
          %1486 = vmatpush1.bf16.msra.mxu0 0
          %1487 = vmatprep.subr.bf16.mxu0 0
          %1488 = vmatpush1.bf16.msra.mxu0 0
          %1489 = vmatprep.subr.bf16.mxu0 0
          %1490 = vmatpush1.bf16.msra.mxu0 0
          %1491 = vmatprep.subr.bf16.mxu0 0
          %1492 = vmatpush1.bf16.msra.mxu0 0
          %1493 = vmatprep.subr.bf16.mxu0 0
          %1494 = vmatpush1.bf16.msra.mxu0 0
          %1495 = vmatprep.mubr.bf16.mxu0 0
          %1496 = vmatmul.mubr.bf16.gmra.mrb[0].mxu0 %v1458
          %v1497 = vpop.f32.mrb[0].mxu0
          %v1498 = vadd.f32 0.0, %v1497
          %v1499 = vpop.f32.mrb[0].mxu0
          %v1500 = vpop.f32.mrb[0].mxu0
          %v1501 = vpop.f32.mrb[0].mxu0
          %1502 = vdwg.mxu0
          %v1504 = vsel %vm1102, %v1363, 0
          %v1507 = vsel %vm1367, %v1101, 0
          %1509 = vmatprep.subr.bf16.mxu0 0
          %1510 = vmatpush1.bf16.msra.mxu0 %v1507
          %1511 = vmatprep.subr.bf16.mxu0 0
          %1512 = vmatpush1.bf16.msra.mxu0 0
          %1513 = vmatprep.subr.bf16.mxu0 0
          %1514 = vmatpush1.bf16.msra.mxu0 0
          %1515 = vmatprep.subr.bf16.mxu0 0
          %1516 = vmatpush1.bf16.msra.mxu0 0
          %1517 = vmatprep.subr.bf16.mxu0 0
          %1518 = vmatpush1.bf16.msra.mxu0 0
          %1519 = vmatprep.subr.bf16.mxu0 0
          %1520 = vmatpush1.bf16.msra.mxu0 0
          %1521 = vmatprep.subr.bf16.mxu0 0
          %1522 = vmatpush1.bf16.msra.mxu0 0
          %1523 = vmatprep.subr.bf16.mxu0 0
          %1524 = vmatpush1.bf16.msra.mxu0 0
          %1525 = vmatprep.subr.bf16.mxu0 0
          %1526 = vmatpush1.bf16.msra.mxu0 0
          %1527 = vmatprep.subr.bf16.mxu0 0
          %1528 = vmatpush1.bf16.msra.mxu0 0
          %1529 = vmatprep.subr.bf16.mxu0 0
          %1530 = vmatpush1.bf16.msra.mxu0 0
          %1531 = vmatprep.subr.bf16.mxu0 0
          %1532 = vmatpush1.bf16.msra.mxu0 0
          %1533 = vmatprep.subr.bf16.mxu0 0
          %1534 = vmatpush1.bf16.msra.mxu0 0
          %1535 = vmatprep.subr.bf16.mxu0 0
          %1536 = vmatpush1.bf16.msra.mxu0 0
          %1537 = vmatprep.subr.bf16.mxu0 0
          %1538 = vmatpush1.bf16.msra.mxu0 0
          %1539 = vmatprep.subr.bf16.mxu0 0
          %1540 = vmatpush1.bf16.msra.mxu0 0
          %1541 = vmatprep.mubr.bf16.mxu0 0
          %1542 = vmatmul.mubr.bf16.gmra.mrb[0].mxu0 %v1504
          %v1543 = vpop.f32.mrb[0].mxu0
          %v1544 = vadd.f32 0.0, %v1543
          %v1545 = vpop.f32.mrb[0].mxu0
          %v1546 = vpop.f32.mrb[0].mxu0
          %v1547 = vpop.f32.mrb[0].mxu0
          %1548 = vdwg.mxu0
          %v1549 = vadd.f32 %v1340, %v1406
          %v1550 = vadd.f32 %v1341, %v1452
          %v1551 = vadd.f32 %v1342, %v1498
          %v1552 = vadd.f32 %v1343, %v1544
          %v1553 = vrcp.pop %v1356
          %v1554 = vrcp.pop %v1357
          %v1555 = vrcp.pop %v1358
          %v1556 = vrcp.pop %v1359
          %v1557 = vmul.f32 %v1549, %v1553
          %v1558 = vmul.f32 %v1550, %v1554
          %v1559 = vmul.f32 %v1551, %v1555
          %v1560 = vmul.f32 %v1552, %v1556
          %v1561 = vcombine.low %v1557, %v1559
          %v1562 = vcombine.high %v1557, %v1559
          %v1564 = vunpack.c.l.s4 1983009808
          %v1565 = vunpack.c.0.s8 %v1564
          %v1566 = vlaneseq
          %v1567 = vshrl.u32 %v1566, 7
          %v1568 = vsub.s32 %v1565, %v1567
          %v1569 = vrot.slane %v1561, %v1568
          %v1571 = vunpack.c.l.s4 1983009808
          %v1572 = vunpack.c.0.s8 %v1571
          %v1573 = vlaneseq
          %v1574 = vshrl.u32 %v1573, 7
          %v1575 = vsub.s32 %v1572, %v1574
          %v1576 = vrot.slane %v1562, %v1575
          %v1577 = vcombine.low %v1558, %v1560
          %v1578 = vcombine.high %v1558, %v1560
          %v1580 = vunpack.c.l.s4 1983009808
          %v1581 = vunpack.c.0.s8 %v1580
          %v1582 = vlaneseq
          %v1583 = vshrl.u32 %v1582, 7
          %v1584 = vsub.s32 %v1581, %v1583
          %v1585 = vrot.slane %v1577, %v1584
          %v1587 = vunpack.c.l.s4 1983009808
          %v1588 = vunpack.c.0.s8 %v1587
          %v1589 = vlaneseq
          %v1590 = vshrl.u32 %v1589, 7
          %v1591 = vsub.s32 %v1588, %v1590
          %v1592 = vrot.slane %v1578, %v1591
          %v1593 = vcombine.low %v1569, %v1585
          %v1594 = vcombine.high %v1569, %v1585
          %v1596 = vunpack.c.l.s4 1934713408
          %v1597 = vunpack.c.0.s8 %v1596
          %v1598 = vlaneseq
          %v1599 = vshrl.u32 %v1598, 7
          %v1600 = vsub.s32 %v1597, %v1599
          %v1601 = vrot.slane %v1593, %v1600
          %v1603 = vunpack.c.l.s4 1934713408
          %v1604 = vunpack.c.0.s8 %v1603
          %v1605 = vlaneseq
          %v1606 = vshrl.u32 %v1605, 7
          %v1607 = vsub.s32 %v1604, %v1606
          %v1608 = vrot.slane %v1594, %v1607
          %v1609 = vcombine.low %v1576, %v1592
          %v1610 = vcombine.high %v1576, %v1592
          %v1612 = vunpack.c.l.s4 1934713408
          %v1613 = vunpack.c.0.s8 %v1612
          %v1614 = vlaneseq
          %v1615 = vshrl.u32 %v1614, 7
          %v1616 = vsub.s32 %v1613, %v1615
          %v1617 = vrot.slane %v1609, %v1616
          %v1619 = vunpack.c.l.s4 1934713408
          %v1620 = vunpack.c.0.s8 %v1619
          %v1621 = vlaneseq
          %v1622 = vshrl.u32 %v1621, 7
          %v1623 = vsub.s32 %v1620, %v1622
          %v1624 = vrot.slane %v1610, %v1623
          %v1625 = vcombine.high %v1601, 0.0
          %v1626 = vcombine.high %v1608, 0.0
          %v1627 = vcombine.high %v1617, 0.0
          %v1628 = vcombine.high %v1624, 0.0
          %v1629 = vcombine.low %v1601, %v1608
          %v1631 = vunpack.c.l.s4 1983009808
          %v1632 = vunpack.c.0.s8 %v1631
          %v1633 = vlaneseq
          %v1634 = vshrl.u32 %v1633, 7
          %v1635 = vsub.s32 %v1632, %v1634
          %v1636 = vrot.slane %v1629, %v1635
          %v1637 = vcombine.low %v1625, %v1626
          %v1639 = vunpack.c.l.s4 1983009808
          %v1640 = vunpack.c.0.s8 %v1639
          %v1641 = vlaneseq
          %v1642 = vshrl.u32 %v1641, 7
          %v1643 = vsub.s32 %v1640, %v1642
          %v1644 = vrot.slane %v1637, %v1643
          %v1645 = vcombine.low %v1617, %v1624
          %v1647 = vunpack.c.l.s4 1983009808
          %v1648 = vunpack.c.0.s8 %v1647
          %v1649 = vlaneseq
          %v1650 = vshrl.u32 %v1649, 7
          %v1651 = vsub.s32 %v1648, %v1650
          %v1652 = vrot.slane %v1645, %v1651
          %v1653 = vcombine.low %v1627, %v1628
          %v1655 = vunpack.c.l.s4 1983009808
          %v1656 = vunpack.c.0.s8 %v1655
          %v1657 = vlaneseq
          %v1658 = vshrl.u32 %v1657, 7
          %v1659 = vsub.s32 %v1656, %v1658
          %v1660 = vrot.slane %v1653, %v1659
          %v1661 = vcombine.low %v1636, %v1644
          %v1662 = vcombine.high %v1636, %v1644
          %v1664 = vunpack.c.l.s4 1934713408
          %v1665 = vunpack.c.0.s8 %v1664
          %v1666 = vlaneseq
          %v1667 = vshrl.u32 %v1666, 7
          %v1668 = vsub.s32 %v1665, %v1667
          %v1669 = vrot.slane %v1661, %v1668
          %v1671 = vunpack.c.l.s4 1934713408
          %v1672 = vunpack.c.0.s8 %v1671
          %v1673 = vlaneseq
          %v1674 = vshrl.u32 %v1673, 7
          %v1675 = vsub.s32 %v1672, %v1674
          %v1676 = vrot.slane %v1662, %v1675
          %v1677 = vcombine.low %v1652, %v1660
          %v1678 = vcombine.high %v1652, %v1660
          %v1680 = vunpack.c.l.s4 1934713408
          %v1681 = vunpack.c.0.s8 %v1680
          %v1682 = vlaneseq
          %v1683 = vshrl.u32 %v1682, 7
          %v1684 = vsub.s32 %v1681, %v1683
          %v1685 = vrot.slane %v1677, %v1684
          %v1687 = vunpack.c.l.s4 1934713408
          %v1688 = vunpack.c.0.s8 %v1687
          %v1689 = vlaneseq
          %v1690 = vshrl.u32 %v1689, 7
          %v1691 = vsub.s32 %v1688, %v1690
          %v1692 = vrot.slane %v1678, %v1691
          %v1693 = vcombine.low %v1669, %v1685
          %v1694 = vcombine.high %v1669, %v1685
          %v1695 = vcombine.low %v1676, %v1692
          %v1696 = vcombine.high %v1676, %v1692
          %1698 = vrot.lane.b32.xlu0 %v1694, 8
          %v1699 = vpop.permute.xlu0 %1698
          %1702 = vrot.lane.b32.xlu0 %v1695, 16
          %v1703 = vpop.permute.xlu0 %1702
          %1706 = vrot.lane.b32.xlu0 %v1696, 24
          %v1707 = vpop.permute.xlu0 %1706
          %v1709 = vsel %vm1102, %v1693, %v1699
          %vm1710 = vcmask 130048
          %v1711 = vsel %vm1710, %v1709, %v1703
          %vm1712 = vcmask 195584
          %v1713 = vsel %vm1712, %v1711, %v1707
          %v1714 = vpack.c.bf16 %v1713, %v1713
          %v1716 = vlaneseq
          %v1717 = vshrl.u32 %v1716, 7
          %v1718 = vsub.s32 0, %v1717
          %v1719 = vrot.slane %v523, %v1718
          %v1725 = vunpack.c.l.b16 %v519
          %v1726 = vunpack.c.l.b16 %v520
          %v1727 = vunpack.c.l.b16 %v521
          %v1728 = vunpack.c.l.b16 %v522
          %v1729 = vpack.c.b16 %v1726, %v1725
          %v1730 = vpack.c.b16 %v1728, %v1727
          %v1734 = vsel %vm557, %v1714, 0
          %1736 = vmatprep.subr.bf16.mxu0 0
          %1737 = vmatpush1.bf16.msra.mxu0 %v1729
          %1738 = vmatprep.subr.bf16.mxu0 0
          %1739 = vmatpush1.bf16.msra.mxu0 %v1730
          %1740 = vmatprep.subr.bf16.mxu0 0
          %1741 = vmatpush1.bf16.msra.mxu0 0
          %1742 = vmatprep.subr.bf16.mxu0 0
          %1743 = vmatpush1.bf16.msra.mxu0 0
          %1744 = vmatprep.subr.bf16.mxu0 0
          %1745 = vmatpush1.bf16.msra.mxu0 0
          %1746 = vmatprep.subr.bf16.mxu0 0
          %1747 = vmatpush1.bf16.msra.mxu0 0
          %1748 = vmatprep.subr.bf16.mxu0 0
          %1749 = vmatpush1.bf16.msra.mxu0 0
          %1750 = vmatprep.subr.bf16.mxu0 0
          %1751 = vmatpush1.bf16.msra.mxu0 0
          %1752 = vmatprep.subr.bf16.mxu0 0
          %1753 = vmatpush1.bf16.msra.mxu0 0
          %1754 = vmatprep.subr.bf16.mxu0 0
          %1755 = vmatpush1.bf16.msra.mxu0 0
          %1756 = vmatprep.subr.bf16.mxu0 0
          %1757 = vmatpush1.bf16.msra.mxu0 0
          %1758 = vmatprep.subr.bf16.mxu0 0
          %1759 = vmatpush1.bf16.msra.mxu0 0
          %1760 = vmatprep.subr.bf16.mxu0 0
          %1761 = vmatpush1.bf16.msra.mxu0 0
          %1762 = vmatprep.subr.bf16.mxu0 0
          %1763 = vmatpush1.bf16.msra.mxu0 0
          %1764 = vmatprep.subr.bf16.mxu0 0
          %1765 = vmatpush1.bf16.msra.mxu0 0
          %1766 = vmatprep.subr.bf16.mxu0 0
          %1767 = vmatpush1.bf16.msra.mxu0 0
          %1768 = vmatprep.mubr.bf16.mxu0 0
          %1769 = vmatmul.mubr.bf16.gmra.mrb[0].mxu0 %v1734
          %v1770 = vpop.f32.mrb[0].mxu0
          %v1771 = vadd.f32 %v1719, %v1770
          %v1772 = vpop.f32.mrb[0].mxu0
          %v1773 = vpop.f32.mrb[0].mxu0
          %v1774 = vpop.f32.mrb[0].mxu0
          %1775 = vdwg.mxu0
          %v1776 = vadd.f32 %v1771, %v556
          %v1777 = vsel %vm557, %v1776, 0.0
          %1778 = vadd.xlane.f32.xlu0 %v1777
          %v1779 = vpop.xlane.xlu0 %1778
          %v1780 = vmul.f32 %v1779, %v561
          %v1781 = vsub.f32 %v1776, %v1780
          %v1782 = vmul.f32 %v1781, %v1781
          %v1783 = vsel %vm557, %v1782, 0.0
          %1784 = vadd.xlane.f32.xlu0 %v1783
          %v1785 = vpop.xlane.xlu0 %1784
          %v1786 = vmul.f32 %v1785, %v561
          %v1787 = vadd.f32 %v1786, 1e-12
          %v1788 = vrsqrt.pop %v1787
          %v1789 = vmul.f32 %v1781, %v1788
          %v1791 = vlaneseq
          %v1792 = vshrl.u32 %v1791, 7
          %v1793 = vsub.s32 0, %v1792
          %v1794 = vrot.slane %v524, %v1793
          %v1796 = vmul.f32 %v1789, %v1794
          %v1798 = vlaneseq
          %v1799 = vshrl.u32 %v1798, 7
          %v1800 = vsub.s32 0, %v1799
          %v1801 = vrot.slane %v525, %v1800
          %v1803 = vadd.f32 %v1796, %v1801
          %v1804 = vpack.c.bf16 %v1803, %v1803
          %v1806 = vlaneseq
          %v1807 = vshrl.u32 %v1806, 7
          %v1808 = vsub.s32 0, %v1807
          %v1809 = vrot.slane %v530, %v1808
          %v1815 = vunpack.c.l.b16 %v526
          %v1816 = vunpack.c.l.b16 %v527
          %v1817 = vunpack.c.l.b16 %v528
          %v1818 = vunpack.c.l.b16 %v529
          %v1819 = vpack.c.b16 %v1816, %v1815
          %v1820 = vpack.c.b16 %v1818, %v1817
          %v1824 = vsel %vm557, %v1804, 0
          %1826 = vmatprep.subr.bf16.mxu0 0
          %1827 = vmatpush1.bf16.msra.mxu0 %v1819
          %1828 = vmatprep.subr.bf16.mxu0 0
          %1829 = vmatpush1.bf16.msra.mxu0 %v1820
          %1830 = vmatprep.subr.bf16.mxu0 0
          %1831 = vmatpush1.bf16.msra.mxu0 0
          %1832 = vmatprep.subr.bf16.mxu0 0
          %1833 = vmatpush1.bf16.msra.mxu0 0
          %1834 = vmatprep.subr.bf16.mxu0 0
          %1835 = vmatpush1.bf16.msra.mxu0 0
          %1836 = vmatprep.subr.bf16.mxu0 0
          %1837 = vmatpush1.bf16.msra.mxu0 0
          %1838 = vmatprep.subr.bf16.mxu0 0
          %1839 = vmatpush1.bf16.msra.mxu0 0
          %1840 = vmatprep.subr.bf16.mxu0 0
          %1841 = vmatpush1.bf16.msra.mxu0 0
          %1842 = vmatprep.subr.bf16.mxu0 0
          %1843 = vmatpush1.bf16.msra.mxu0 0
          %1844 = vmatprep.subr.bf16.mxu0 0
          %1845 = vmatpush1.bf16.msra.mxu0 0
          %1846 = vmatprep.subr.bf16.mxu0 0
          %1847 = vmatpush1.bf16.msra.mxu0 0
          %1848 = vmatprep.subr.bf16.mxu0 0
          %1849 = vmatpush1.bf16.msra.mxu0 0
          %1850 = vmatprep.subr.bf16.mxu0 0
          %1851 = vmatpush1.bf16.msra.mxu0 0
          %1852 = vmatprep.subr.bf16.mxu0 0
          %1853 = vmatpush1.bf16.msra.mxu0 0
          %1854 = vmatprep.subr.bf16.mxu0 0
          %1855 = vmatpush1.bf16.msra.mxu0 0
          %1856 = vmatprep.subr.bf16.mxu0 0
          %1857 = vmatpush1.bf16.msra.mxu0 0
          %1858 = vmatprep.mubr.bf16.mxu0 0
          %1859 = vmatmul.mubr.bf16.gmra.mrb[0].mxu0 %v1824
          %v1860 = vpop.f32.mrb[0].mxu0
          %v1861 = vadd.f32 %v1809, %v1860
          %v1862 = vpop.f32.mrb[0].mxu0
          %v1863 = vpop.f32.mrb[0].mxu0
          %v1864 = vpop.f32.mrb[0].mxu0
          %1865 = vdwg.mxu0
          %v1866 = vmul.f32 %v1861, 0.5
          %v1867 = vmul.f32 %v1861, 0.044715
          %v1868 = vmul.f32 %v1867, %v1861
          %v1869 = vmul.f32 %v1868, %v1861
          %v1870 = vadd.f32 %v1861, %v1869
          %v1871 = vmul.f32 %v1870, 0.7978845
          %v1872 = vtanh.pop %v1871
          %v1873 = vadd.f32 %v1872, 1.0
          %v1874 = vmul.f32 %v1866, %v1873
          %v1875 = vpack.c.bf16 %v1874, %v1874
          %v1877 = vlaneseq
          %v1878 = vshrl.u32 %v1877, 7
          %v1879 = vsub.s32 0, %v1878
          %v1880 = vrot.slane %v547, %v1879
          %v1898 = vunpack.c.l.b16 %v531
          %v1899 = vunpack.c.l.b16 %v532
          %v1900 = vunpack.c.l.b16 %v533
          %v1901 = vunpack.c.l.b16 %v534
          %v1902 = vunpack.c.l.b16 %v535
          %v1903 = vunpack.c.l.b16 %v536
          %v1904 = vunpack.c.l.b16 %v537
          %v1905 = vunpack.c.l.b16 %v538
          %v1906 = vunpack.c.l.b16 %v539
          %v1907 = vunpack.c.l.b16 %v540
          %v1908 = vunpack.c.l.b16 %v541
          %v1909 = vunpack.c.l.b16 %v542
          %v1910 = vunpack.c.l.b16 %v543
          %v1911 = vunpack.c.l.b16 %v544
          %v1912 = vunpack.c.l.b16 %v545
          %v1913 = vunpack.c.l.b16 %v546
          %v1914 = vpack.c.b16 %v1899, %v1898
          %v1915 = vpack.c.b16 %v1901, %v1900
          %v1916 = vpack.c.b16 %v1903, %v1902
          %v1917 = vpack.c.b16 %v1905, %v1904
          %v1918 = vpack.c.b16 %v1907, %v1906
          %v1919 = vpack.c.b16 %v1909, %v1908
          %v1920 = vpack.c.b16 %v1911, %v1910
          %v1921 = vpack.c.b16 %v1913, %v1912
          %1930 = vmatprep.subr.bf16.mxu0 0
          %1931 = vmatpush1.bf16.msra.mxu0 %v1914
          %1932 = vmatprep.subr.bf16.mxu0 0
          %1933 = vmatpush1.bf16.msra.mxu0 %v1915
          %1934 = vmatprep.subr.bf16.mxu0 0
          %1935 = vmatpush1.bf16.msra.mxu0 %v1916
          %1936 = vmatprep.subr.bf16.mxu0 0
          %1937 = vmatpush1.bf16.msra.mxu0 %v1917
          %1938 = vmatprep.subr.bf16.mxu0 0
          %1939 = vmatpush1.bf16.msra.mxu0 %v1918
          %1940 = vmatprep.subr.bf16.mxu0 0
          %1941 = vmatpush1.bf16.msra.mxu0 %v1919
          %1942 = vmatprep.subr.bf16.mxu0 0
          %1943 = vmatpush1.bf16.msra.mxu0 %v1920
          %1944 = vmatprep.subr.bf16.mxu0 0
          %1945 = vmatpush1.bf16.msra.mxu0 %v1921
          %1946 = vmatprep.subr.bf16.mxu0 0
          %1947 = vmatpush1.bf16.msra.mxu0 0
          %1948 = vmatprep.subr.bf16.mxu0 0
          %1949 = vmatpush1.bf16.msra.mxu0 0
          %1950 = vmatprep.subr.bf16.mxu0 0
          %1951 = vmatpush1.bf16.msra.mxu0 0
          %1952 = vmatprep.subr.bf16.mxu0 0
          %1953 = vmatpush1.bf16.msra.mxu0 0
          %1954 = vmatprep.subr.bf16.mxu0 0
          %1955 = vmatpush1.bf16.msra.mxu0 0
          %1956 = vmatprep.subr.bf16.mxu0 0
          %1957 = vmatpush1.bf16.msra.mxu0 0
          %1958 = vmatprep.subr.bf16.mxu0 0
          %1959 = vmatpush1.bf16.msra.mxu0 0
          %1960 = vmatprep.subr.bf16.mxu0 0
          %1961 = vmatpush1.bf16.msra.mxu0 0
          %1962 = vmatprep.mubr.bf16.mxu0 0
          %1963 = vmatmul.mubr.bf16.gmra.mrb[0].mxu0 %v1875
          %v1964 = vpop.f32.mrb[0].mxu0
          %v1965 = vadd.f32 %v1880, %v1964
          %v1966 = vpop.f32.mrb[0].mxu0
          %v1967 = vpop.f32.mrb[0].mxu0
          %v1968 = vpop.f32.mrb[0].mxu0
          %1969 = vdwg.mxu0
          %v1970 = vadd.f32 %v1965, %v1776
        $region89: #{body_expert_forward.1} parent=79 // loop_footer
          %s555 = sadd.s32 1, %s551
        $region90: #{body_expert_forward.1} parent=79 // loop_footer_branch
          %550 = sbr.rel target = $region86
        $region91: #{body_expert_forward.1} parent=79 // loop_exit
          _
        %v1971 = vld [vmem:[%s13] sm:$0x1]
        %v1972 = vld [vmem:[%s14] sm:$0x1]
        %vm1973 = vcmask 261120
        %v1974 = vsel %vm1973, %v556, 0.0
        %1975 = vadd.xlane.f32.xlu0 %v1974
        %v1976 = vpop.xlane.xlu0 %1975
        %v1977 = vrcp.pop 32.0
        %v1978 = vmul.f32 %v1976, %v1977
        %v1979 = vsub.f32 %v556, %v1978
        %v1980 = vmul.f32 %v1979, %v1979
        %v1981 = vsel %vm1973, %v1980, 0.0
        %1982 = vadd.xlane.f32.xlu0 %v1981
        %v1983 = vpop.xlane.xlu0 %1982
        %v1984 = vmul.f32 %v1983, %v1977
        %v1985 = vadd.f32 %v1984, 1e-12
        %v1986 = vrsqrt.pop %v1985
        %v1987 = vmul.f32 %v1979, %v1986
        %v1989 = vlaneseq
        %v1990 = vshrl.u32 %v1989, 7
        %v1991 = vsub.s32 0, %v1990
        %v1992 = vrot.slane %v1971, %v1991
        %v1994 = vmul.f32 %v1987, %v1992
        %v1996 = vlaneseq
        %v1997 = vshrl.u32 %v1996, 7
        %v1998 = vsub.s32 0, %v1997
        %v1999 = vrot.slane %v1972, %v1998
        %v2001 = vadd.f32 %v1994, %v1999
        %2002 = vst.msk [vmem:[%s509] sm:$0xff] %vm1973, %v2001
        %s2003 = sand.u32 %s360, 1
        %s2004 = scalar_lea.sflag [#allocation4], %s2003
        %s2005 = sand.u32 %s360, 1
        %s2006 = smul.addr %s2005, 8
        %s2007 = scalar_lea.vmem [#allocation5], %s2006
        // Predicated region
        $region92: #{body_expert_forward.1} parent=79 // pred_check
          %p2008 = pneg %p370
        $region93: #{body_expert_forward.1} parent=79 // pred_check_branch
          %2010 = sbr.rel (%p2008) target = $region95
        $region94: #{body_expert_forward.1} parent=79 // pred_region
          %s2012 = ssub.s32 128, 128
          %2013 = vsyncadd %s2004, %s2012
          %s2014 = smul.addr %s32, 128
          %s2015 = scalar_lea.hbm %s15, %s2014
          %s2017 = sshll.u32 %s2007, 4
          %s2018 = int_to_ptr.vmem [resolvable:$true] %s2017
          %2020 = dma.vmem_to_hbm [thread:$0]  %s2018, 128, %s2015, %s2004
        $region95: #{body_expert_forward.1} parent=79 // pred_fallthru
          _
      $region80: #{body_expert_forward.1} parent=5 // pred_fallthru
        _
      %p2021 = scmp.le.s32.totalorder 2, %s27
      // Predicated region
      $region96: #{body_expert_forward.1} parent=5 // pred_check
        %p2022 = pneg %p2021
      $region97: #{body_expert_forward.1} parent=5 // pred_check_branch
        %2024 = sbr.rel (%p2022) target = $region99
      $region98: #{body_expert_forward.1} parent=5 // pred_region
        %s2025 = ssub.s32 %s27, 2
        // Predicated region
        $region100: #{body_expert_forward.1} parent=98 // pred_check
          %p2026 = pneg %p376
        $region101: #{body_expert_forward.1} parent=98 // pred_check_branch
          %2028 = sbr.rel (%p2026) target = $region103
        $region102: #{body_expert_forward.1} parent=98 // pred_region
          %s2029 = sand.u32 %s361, 1
          %s2030 = scalar_lea.sflag [#allocation4], %s2029
          %s2031 = sand.u32 %s361, 1
          %s2032 = smul.addr %s2031, 8
          %s2033 = scalar_lea.vmem [#allocation5], %s2032
          %2034 = dma.done %s2030, 128
        $region103: #{body_expert_forward.1} parent=98 // pred_fallthru
          _
      $region99: #{body_expert_forward.1} parent=5 // pred_fallthru
        _
    $region6: #{body_expert_forward.1} parent=1 // loop_footer
      %s31 = sadd.s32 1, %s27
    $region7: #{body_expert_forward.1} parent=1 // loop_footer_branch
      %26 = sbr.rel target = $region3
    $region8: #{body_expert_forward.1} parent=1 // loop_exit
      _
    %2035 = vsyncpa [#allocation3], 1
    %s2036 = scalar_lea.sflag [#allocation3], 1
    %2037 = vsyncpa %s2036, 1
    %2038 = vsyncpa [#allocation4], 1
    %s2039 = scalar_lea.sflag [#allocation4], 1
    %2040 = vsyncpa %s2039, 1

</llo_original>
